<compile_context>
chip_gen: v7x
topology: tpu7x:2x2x1
jax: 0.10.0
libtpu: 0.0.40
codegen_flags: <defaults>
</compile_context>

<pallas_src>
import functools

import jax
import jax.numpy as jnp
import numpy as np
from jax import lax
from jax.experimental import pallas as pl
from jax.experimental.pallas import tpu as pltpu

LANE = 128      # vreg lane width
SUBLANE = 8     # vreg sublane count (f32)


def _round_up(x, m):
    return ((x + m - 1) // m) * m


# ----------------------------------------------------------------------------
# Kernel
# ----------------------------------------------------------------------------
def _two_layer_lstm_kernel(x_ref,      # (1, L*BT, H_in)  per-batch-tile, time-major
                           wih_ref,    # (H_in, G)        W_ih^T, gate-packed
                           whh_ref,    # (gw,  G)         W_hh^T, gate-packed
                           b_ref,      # (1, G)           b_ih + b_hh (f32)
                           w1_ref,     # (L*H1p, H2p)     linear_1 weight^T, slab layout
                           b1_ref,     # (1, H2p)         f32
                           w2_ref,     # (H2p, Hop)       linear_2 weight^T, lane-padded
                           b2_ref,     # (1, Hop)         f32
                           out_ref,    # (BT, Hop)
                           pre_sc,     # (L*BT, G) f32  : hoisted x@W_ih + bias
                           hall_sc,    # (BT, L*H1p) f32: deferred relu(h_t) slabs
                           *, L, BT, H1p, gw, H_out, compact):
    mm = wih_ref.dtype   # bf16 by default (all generations), f32 for strict path
    f32 = jnp.float32

    # ---- Hoisted input projection: one big matmul, off the serial path -----
    pre_sc[...] = (jnp.dot(x_ref[0].astype(mm), wih_ref[...],
                           preferred_element_type=f32) + b_ref[...])

    # Zero the deferred-ReLU slab so padded lanes contribute exactly 0 to the
    # epilogue W1 matmul (W1 pad rows are zero too; belt and braces).
    hall_sc[...] = jnp.zeros_like(hall_sc)

    h = jnp.zeros((BT, gw), f32)
    c = jnp.zeros((BT, gw), f32)

    if compact:
        # Hoisted: g-gate lane mask over the compact [i|f|g|o] layout.
        lane = lax.broadcasted_iota(jnp.int32, (BT, pre_sc.shape[1]), 1)
        g_mask = (lane >= 2 * gw) & (lane < 3 * gw)

    # Fully static recurrence (L is small & static); h/c stay in vregs.
    for t in range(L):
        gates = pre_sc[t * BT:(t + 1) * BT, :] + jnp.dot(
            h.astype(mm), whh_ref[...], preferred_element_type=f32)   # (BT, G) f32

        if compact:
            # One sigmoid + one tanh EUP pass over a single 128-lane block,
            # then per-gate extraction (XLU/VPU slots, which have slack).
            sig = jax.nn.sigmoid(gates)
            tnh = jnp.tanh(gates)
            act = jnp.where(g_mask, tnh, sig)
            i_g = act[:, 0 * gw:1 * gw]
            f_g = act[:, 1 * gw:2 * gw]
            g_g = act[:, 2 * gw:3 * gw]
            o_g = act[:, 3 * gw:4 * gw]
        else:
            # Per-gate 128-lane-aligned blocks (large-H1 layout).
            i_g = jax.nn.sigmoid(gates[:, 0 * gw:1 * gw])
            f_g = jax.nn.sigmoid(gates[:, 1 * gw:2 * gw])
            g_g = jnp.tanh(gates[:, 2 * gw:3 * gw])
            o_g = jax.nn.sigmoid(gates[:, 3 * gw:4 * gw])

        c = f_g * c + i_g * g_g
        h = o_g * jnp.tanh(c)

        # Deferred accumulation: stash relu(h_t) into its 128-aligned slab;
        # the single big W1 matmul happens once in the epilogue.
        hall_sc[:, t * H1p:t * H1p + gw] = jnp.maximum(h, 0.0)

    # ---- Epilogue: fused linear_1 + linear_2 + masked softmax ---------------
    x1 = (jnp.dot(hall_sc[...].astype(mm), w1_ref[...],
                  preferred_element_type=f32) + b1_ref[...])          # (BT, H2p)
    x2 = (jnp.dot(x1.astype(mm), w2_ref[...],
                  preferred_element_type=f32) + b2_ref[...])          # (BT, Hop)

    lane_o = lax.broadcasted_iota(jnp.int32, x2.shape, 1)
    x2m = jnp.where(lane_o < H_out, x2, -jnp.inf)     # exclude pad lanes
    m = jnp.max(x2m, axis=1, keepdims=True)
    e = jnp.exp(x2m - m)                              # pad lanes -> exp(-inf) = 0
    s = jnp.sum(e, axis=1, keepdims=True)
    # Exact reciprocal: output rows sum to 1 up to f32 rounding.
    out_ref[...] = (e * pl.reciprocal(s, approx=False)).astype(out_ref.dtype)


# ----------------------------------------------------------------------------
# Wrapper: layout / padding plumbing + pallas_call
# ----------------------------------------------------------------------------
def two_layer_lstm_forward(x, params, mm_dtype=jnp.bfloat16):
    """x: (B, L, H_in) batch_first, like the PyTorch module. Returns (B, H_out)."""
    B, L, H_in = x.shape
    w_ih, w_hh = params["w_ih"], params["w_hh"]
    b_ih, b_hh = params["b_ih"], params["b_hh"]
    w1, b1, w2, b2 = params["w1"], params["b1"], params["w2"], params["b2"]
    H1 = w_hh.shape[1]
    H2, H_out = w1.shape[0], w2.shape[0]

    mm_dtype = jnp.dtype(mm_dtype)
    use_bf16 = mm_dtype == jnp.dtype(jnp.bfloat16)
    f32 = jnp.float32

    H1p = _round_up(H1, LANE)       # slab stride for h_all / W1 rows
    H2p = _round_up(H2, LANE)
    Hop = _round_up(H_out, LANE)    # lane-dense output width

    compact = (4 * H1) <= LANE      # all four gates fit in one 128-lane block
    if compact:
        gw = H1
        G = _round_up(4 * H1, LANE)
    else:
        gw = H1p
        G = 4 * H1p

    # Batch tile: largest multiple of the sublane pack holding B, capped at 256.
    pack = 16 if use_bf16 else SUBLANE
    BT = min(_round_up(B, pack), 256)
    B_pad = _round_up(B, BT)
    n_bt = B_pad // BT

    # --- weight packing (zero-padding only; mathematically exact) -----------
    if compact:
        # Compact gate layout: [i|f|g|o] blocks of width H1 in one lane group.
        wih_p = jnp.zeros((H_in, G), f32).at[:, :4 * H1].set(w_ih.T.astype(f32))
        whh_p = jnp.zeros((H1, G), f32).at[:, :4 * H1].set(w_hh.T.astype(f32))
        b_gate = jnp.zeros((1, G), f32).at[0, :4 * H1].set((b_ih + b_hh).astype(f32))
    else:
        def pad_gate_cols(w_t):     # (rows, 4*H1) -> (rows, 4*H1p)
            rows = w_t.shape[0]
            blocks = w_t.reshape(rows, 4, H1)
            out = jnp.zeros((rows, 4, H1p), f32).at[:, :, :H1].set(blocks)
            return out.reshape(rows, G)

        wih_p = pad_gate_cols(w_ih.T.astype(f32))                          # (H_in, G)
        whh_p = jnp.zeros((H1p, G), f32).at[:H1, :].set(
            pad_gate_cols(w_hh.T.astype(f32)))                             # (H1p, G)
        b_gate = pad_gate_cols((b_ih + b_hh).astype(f32).reshape(1, 4 * H1))

    # W1 in per-timestep slab layout: rows [t*H1p : t*H1p+H1) hold w1.T rows
    # for timestep t, rows [H1:H1p) of each slab are zero.
    w1_t = w1.T.astype(f32).reshape(L, H1, H2)
    w1_p = (jnp.zeros((L, H1p, H2p), f32).at[:, :H1, :H2].set(w1_t)
            .reshape(L * H1p, H2p))
    b1_p = jnp.zeros((1, H2p), f32).at[0, :H2].set(b1.astype(f32))
    w2_p = jnp.zeros((H2p, Hop), f32).at[:H2, :H_out].set(w2.T.astype(f32))
    b2_p = jnp.zeros((1, Hop), f32).at[0, :H_out].set(b2.astype(f32))

    wih_p = wih_p.astype(mm_dtype)
    whh_p = whh_p.astype(mm_dtype)
    w1_p = w1_p.astype(mm_dtype)
    w2_p = w2_p.astype(mm_dtype)

    # --- input packing: pad batch to the tile, per-tile time-major ----------
    # NOTE: padded batch rows (B..B_pad) develop nonzero h/c from the gate
    # bias; they never mix with real rows and are sliced off below.
    x_p = jnp.zeros((B_pad, L, H_in), f32).at[:B].set(x.astype(f32))
    x_tiles = (x_p.reshape(n_bt, BT, L, H_in)
                  .transpose(0, 2, 1, 3)
                  .reshape(n_bt, L * BT, H_in))            # (n_bt, L*BT, H_in)

    kernel = functools.partial(_two_layer_lstm_kernel,
                               L=L, BT=BT, H1p=H1p, gw=gw, H_out=H_out,
                               compact=compact)

    out_pad = pl.pallas_call(
        kernel,
        out_shape=jax.ShapeDtypeStruct((B_pad, Hop), f32),
        grid=(n_bt,),
        in_specs=[
            pl.BlockSpec((1, L * BT, H_in), lambda b: (b, 0, 0)),   # x batch tile
            pl.BlockSpec((H_in, G), lambda b: (0, 0)),              # W_ih^T
            pl.BlockSpec((gw, G), lambda b: (0, 0)),                # W_hh^T
            pl.BlockSpec((1, G), lambda b: (0, 0)),                 # gate bias
            pl.BlockSpec((L * H1p, H2p), lambda b: (0, 0)),         # W1^T slabs
            pl.BlockSpec((1, H2p), lambda b: (0, 0)),               # b1
            pl.BlockSpec((H2p, Hop), lambda b: (0, 0)),             # W2^T
            pl.BlockSpec((1, Hop), lambda b: (0, 0)),               # b2
        ],
        out_specs=pl.BlockSpec((BT, Hop), lambda b: (b, 0)),
        scratch_shapes=[
            pltpu.VMEM((L * BT, G), jnp.float32),       # hoisted pre-gates
            pltpu.VMEM((BT, L * H1p), jnp.float32),     # deferred relu(h) slabs
        ],
        compiler_params=pltpu.CompilerParams(
            # Batch tiles shard across TensorCores on v7x when n_bt >= 2; at
            # small B the grid is (1,) and the kernel runs on one core.
            dimension_semantics=("parallel",)),
    )(x_tiles, wih_p, whh_p, b_gate, w1_p, b1_p, w2_p, b2_p)

    return out_pad[:B, :H_out]


# ----------------------------------------------------------------------------
# Pure-JAX reference (mirrors the PyTorch forward) for correctness checking
# ----------------------------------------------------------------------------
def reference_forward(x, params):
    w_ih, w_hh, b_ih, b_hh = params["w_ih"], params["w_hh"], params["b_ih"], params["b_hh"]
    w1, b1, w2, b2 = params["w1"], params["b1"], params["w2"], params["b2"]
    B, L, H_in = x.shape
    H1 = w_hh.shape[1]

    def step(carry, x_t):
        h, c = carry
        gates = x_t @ w_ih.T + b_ih + h @ w_hh.T + b_hh
        i, f, g, o = jnp.split(gates, 4, axis=1)
        i, f, g, o = jax.nn.sigmoid(i), jax.nn.sigmoid(f), jnp.tanh(g), jax.nn.sigmoid(o)
        c = f * c + i * g
        h = o * jnp.tanh(c)
        return (h, c), h

    h0 = jnp.zeros((B, H1), jnp.float32)
    c0 = jnp.zeros((B, H1), jnp.float32)
    _, hs = lax.scan(step, (h0, c0), jnp.swapaxes(x, 0, 1))   # (L, B, H1)
    x_lstm = jnp.swapaxes(hs, 0, 1)                           # (B, L, H1)
    x_act = jnp.maximum(x_lstm, 0.0)
    x_flat = x_act.reshape(B, L * H1)
    x1 = x_flat @ w1.T + b1
    x2 = x1 @ w2.T + b2
    return jax.nn.softmax(x2, axis=1)


# ----------------------------------------------------------------------------
# Main
# ----------------------------------------------------------------------------
if __name__ == "__main__":
    B, L, H_in = 4, 8, 16
    H1, H2, H_out = 32, 32, 8

    key = jax.random.PRNGKey(0)
    keys = jax.random.split(key, 9)
    s_lstm = 1.0 / np.sqrt(H1)
    s_l1 = 1.0 / np.sqrt(L * H1)
    s_l2 = 1.0 / np.sqrt(H2)

    params = {
        # nn.LSTM parameters (gate order i, f, g, o)
        "w_ih": jax.random.uniform(keys[0], (4 * H1, H_in), jnp.float32, -s_lstm, s_lstm),
        "w_hh": jax.random.uniform(keys[1], (4 * H1, H1), jnp.float32, -s_lstm, s_lstm),
        "b_ih": jax.random.uniform(keys[2], (4 * H1,), jnp.float32, -s_lstm, s_lstm),
        "b_hh": jax.random.uniform(keys[3], (4 * H1,), jnp.float32, -s_lstm, s_lstm),
        # nn.Linear(L*H1 -> H2)
        "w1": jax.random.uniform(keys[4], (H2, L * H1), jnp.float32, -s_l1, s_l1),
        "b1": jax.random.uniform(keys[5], (H2,), jnp.float32, -s_l1, s_l1),
        # nn.Linear(H2 -> H_out)
        "w2": jax.random.uniform(keys[6], (H_out, H2), jnp.float32, -s_l2, s_l2),
        "b2": jax.random.uniform(keys[7], (H_out,), jnp.float32, -s_l2, s_l2),
    }

    x = jax.random.normal(keys[8], (B, L, H_in), jnp.float32)
    ref = jax.block_until_ready(reference_forward(x, params))

    # Strict check: exact f32 path (runs on any TPU generation).
    out_f32 = jax.block_until_ready(
        two_layer_lstm_forward(x, params, mm_dtype=jnp.float32))
    np.testing.assert_allclose(np.asarray(out_f32), np.asarray(ref),
                               atol=1e-5, rtol=1e-5)

    # Default fast path: bf16 MXU operands (all generations), f32 gate math.
    out_fast = jax.block_until_ready(two_layer_lstm_forward(x, params))
    np.testing.assert_allclose(np.asarray(out_fast), np.asarray(ref),
                               atol=2e-2, rtol=2e-2)

    assert out_f32.shape == (B, H_out) and out_fast.shape == (B, H_out)
    print("KERNEL_OK")
</pallas_src>

<mosaic_0001>
module attributes {stable_mosaic.version = 11 : i64} {
  func.func @_two_layer_lstm_kernel(%arg0: i32, %arg1: memref<1x64x16xf32, #tpu.memory_space<vmem>>, %arg2: memref<16x128xf32, #tpu.memory_space<vmem>>, %arg3: memref<32x128xf32, #tpu.memory_space<vmem>>, %arg4: memref<1x128xf32, #tpu.memory_space<vmem>>, %arg5: memref<1024x128xf32, #tpu.memory_space<vmem>>, %arg6: memref<1x128xf32, #tpu.memory_space<vmem>>, %arg7: memref<128x128xf32, #tpu.memory_space<vmem>>, %arg8: memref<1x128xf32, #tpu.memory_space<vmem>>, %arg9: memref<8x128xf32, #tpu.memory_space<vmem>>, %arg10: memref<64x128xf32, #tpu.memory_space<vmem>>, %arg11: memref<8x1024xf32, #tpu.memory_space<vmem>>) attributes {dimension_semantics = [#tpu.dimension_semantics<parallel>], iteration_bounds = array<i64: 1>, scalar_prefetch = 0 : i64, scratch_operands = 2 : i64, tpu.core_type = #tpu.core_type<tc>, window_params = [{transform_indices = @transform_0, window_bounds = array<i64: 1, 64, 16>}, {pipeline_mode = #tpu.pipeline_mode<synchronous>, transform_indices = @transform_1, window_bounds = array<i64: 16, 128>}, {pipeline_mode = #tpu.pipeline_mode<synchronous>, transform_indices = @transform_2, window_bounds = array<i64: 32, 128>}, {pipeline_mode = #tpu.pipeline_mode<synchronous>, transform_indices = @transform_3, window_bounds = array<i64: 1, 128>}, {pipeline_mode = #tpu.pipeline_mode<synchronous>, transform_indices = @transform_4, window_bounds = array<i64: 1024, 128>}, {pipeline_mode = #tpu.pipeline_mode<synchronous>, transform_indices = @transform_5, window_bounds = array<i64: 1, 128>}, {pipeline_mode = #tpu.pipeline_mode<synchronous>, transform_indices = @transform_6, window_bounds = array<i64: 128, 128>}, {pipeline_mode = #tpu.pipeline_mode<synchronous>, transform_indices = @transform_7, window_bounds = array<i64: 1, 128>}, {transform_indices = @transform_8, window_bounds = array<i64: 8, 128>}]} {
    %c0 = arith.constant 0 : index
    %c0_0 = arith.constant 0 : index
    %c0_1 = arith.constant 0 : index
    %0 = vector.load %arg1[%c0, %c0_0, %c0_1] : memref<1x64x16xf32, #tpu.memory_space<vmem>>, vector<1x64x16xf32>
    %1 = vector.shape_cast %0 : vector<1x64x16xf32> to vector<64x16xf32>
    %c0_2 = arith.constant 0 : index
    %c0_3 = arith.constant 0 : index
    %2 = vector.load %arg2[%c0_2, %c0_3] : memref<16x128xf32, #tpu.memory_space<vmem>>, vector<16x128xf32>
    %cst = arith.constant dense<0.000000e+00> : vector<64x128xf32>
    %3 = tpu.matmul %1, %2, %cst {dimension_numbers = #tpu.dot_dimension_numbers<[1], [0], [0], [1], [0, 0, 1, 1], [], []>} : vector<64x16xf32>, vector<16x128xf32>, vector<64x128xf32> -> vector<64x128xf32>
    %c0_4 = arith.constant 0 : index
    %c0_5 = arith.constant 0 : index
    %4 = vector.load %arg4[%c0_4, %c0_5] : memref<1x128xf32, #tpu.memory_space<vmem>>, vector<1x128xf32>
    %5 = vector.broadcast %4 : vector<1x128xf32> to vector<64x128xf32>
    %6 = arith.addf %3, %5 : vector<64x128xf32>
    %c0_6 = arith.constant 0 : index
    %c0_7 = arith.constant 0 : index
    %7 = vector.load %arg10[%c0_6, %c0_7] : memref<64x128xf32, #tpu.memory_space<vmem>>, vector<64x128xf32>
    tpu.vector_store %arg10[%c0_6, %c0_7], %6 {strides = array<i32>} : memref<64x128xf32, #tpu.memory_space<vmem>>, vector<64x128xf32>,
    %cst_8 = arith.constant 0.000000e+00 : f32
    %8 = vector.broadcast %cst_8 : f32 to vector<8x1024xf32>
    %c0_9 = arith.constant 0 : index
    %c0_10 = arith.constant 0 : index
    %9 = vector.load %arg11[%c0_9, %c0_10] : memref<8x1024xf32, #tpu.memory_space<vmem>>, vector<8x1024xf32>
    tpu.vector_store %arg11[%c0_9, %c0_10], %8 {strides = array<i32>} : memref<8x1024xf32, #tpu.memory_space<vmem>>, vector<8x1024xf32>,
    %cst_11 = arith.constant 0.000000e+00 : f32
    %10 = vector.broadcast %cst_11 : f32 to vector<8x32xf32>
    %cst_12 = arith.constant 0.000000e+00 : f32
    %11 = vector.broadcast %cst_12 : f32 to vector<8x32xf32>
    %12 = tpu.iota {dimensions = array<i32: 1>} : vector<8x128xi32>
    %c64_i32 = arith.constant 64 : i32
    %13 = vector.broadcast %c64_i32 : i32 to vector<8x128xi32>
    %14 = arith.cmpi sge, %12, %13 : vector<8x128xi32>
    %c96_i32 = arith.constant 96 : i32
    %15 = vector.broadcast %c96_i32 : i32 to vector<8x128xi32>
    %16 = arith.cmpi slt, %12, %15 : vector<8x128xi32>
    %17 = arith.andi %14, %16 : vector<8x128xi1>
    %c0_13 = arith.constant 0 : index
    %c0_14 = arith.constant 0 : index
    %18 = vector.load %arg10[%c0_13, %c0_14] : memref<64x128xf32, #tpu.memory_space<vmem>>, vector<8x128xf32>
    %c0_15 = arith.constant 0 : index
    %c0_16 = arith.constant 0 : index
    %19 = vector.load %arg3[%c0_15, %c0_16] : memref<32x128xf32, #tpu.memory_space<vmem>>, vector<32x128xf32>
    %cst_17 = arith.constant dense<0.000000e+00> : vector<8x128xf32>
    %20 = tpu.matmul %10, %19, %cst_17 {dimension_numbers = #tpu.dot_dimension_numbers<[1], [0], [0], [1], [0, 0, 1, 1], [], []>} : vector<8x32xf32>, vector<32x128xf32>, vector<8x128xf32> -> vector<8x128xf32>
    %21 = arith.addf %18, %20 : vector<8x128xf32>
    %22 = arith.negf %21 : vector<8x128xf32>
    %23 = math.exp %22 : vector<8x128xf32>
    %cst_18 = arith.constant 1.000000e+00 : f32
    %24 = vector.broadcast %cst_18 : f32 to vector<8x128xf32>
    %25 = arith.addf %24, %23 : vector<8x128xf32>
    %26 = arith.divf %24, %25 : vector<8x128xf32>
    %27 = math.tanh %21 : vector<8x128xf32>
    %28 = arith.select %17, %27, %26 : vector<8x128xi1>, vector<8x128xf32>
    %29 = vector.extract_strided_slice %28 {offsets = [0, 0], sizes = [8, 32], strides = [1, 1]} : vector<8x128xf32> to vector<8x32xf32>
    %30 = vector.extract_strided_slice %28 {offsets = [0, 32], sizes = [8, 32], strides = [1, 1]} : vector<8x128xf32> to vector<8x32xf32>
    %31 = vector.extract_strided_slice %28 {offsets = [0, 64], sizes = [8, 32], strides = [1, 1]} : vector<8x128xf32> to vector<8x32xf32>
    %32 = vector.extract_strided_slice %28 {offsets = [0, 96], sizes = [8, 32], strides = [1, 1]} : vector<8x128xf32> to vector<8x32xf32>
    %33 = arith.mulf %30, %11 : vector<8x32xf32>
    %34 = arith.mulf %29, %31 : vector<8x32xf32>
    %35 = arith.addf %33, %34 : vector<8x32xf32>
    %36 = math.tanh %35 : vector<8x32xf32>
    %37 = arith.mulf %32, %36 : vector<8x32xf32>
    %cst_19 = arith.constant 0.000000e+00 : f32
    %38 = vector.broadcast %cst_19 : f32 to vector<8x32xf32>
    %39 = arith.maximumf %37, %38 : vector<8x32xf32>
    %c0_20 = arith.constant 0 : index
    %c0_21 = arith.constant 0 : index
    %40 = vector.load %arg11[%c0_20, %c0_21] : memref<8x1024xf32, #tpu.memory_space<vmem>>, vector<8x32xf32>
    tpu.vector_store %arg11[%c0_20, %c0_21], %39 {strides = array<i32>} : memref<8x1024xf32, #tpu.memory_space<vmem>>, vector<8x32xf32>,
    %c8 = arith.constant 8 : index
    %c0_22 = arith.constant 0 : index
    %41 = vector.load %arg10[%c8, %c0_22] : memref<64x128xf32, #tpu.memory_space<vmem>>, vector<8x128xf32>
    %c0_23 = arith.constant 0 : index
    %c0_24 = arith.constant 0 : index
    %42 = vector.load %arg3[%c0_23, %c0_24] : memref<32x128xf32, #tpu.memory_space<vmem>>, vector<32x128xf32>
    %cst_25 = arith.constant dense<0.000000e+00> : vector<8x128xf32>
    %43 = tpu.matmul %37, %42, %cst_25 {dimension_numbers = #tpu.dot_dimension_numbers<[1], [0], [0], [1], [0, 0, 1, 1], [], []>} : vector<8x32xf32>, vector<32x128xf32>, vector<8x128xf32> -> vector<8x128xf32>
    %44 = arith.addf %41, %43 : vector<8x128xf32>
    %45 = arith.negf %44 : vector<8x128xf32>
    %46 = math.exp %45 : vector<8x128xf32>
    %cst_26 = arith.constant 1.000000e+00 : f32
    %47 = vector.broadcast %cst_26 : f32 to vector<8x128xf32>
    %48 = arith.addf %47, %46 : vector<8x128xf32>
    %49 = arith.divf %47, %48 : vector<8x128xf32>
    %50 = math.tanh %44 : vector<8x128xf32>
    %51 = arith.select %17, %50, %49 : vector<8x128xi1>, vector<8x128xf32>
    %52 = vector.extract_strided_slice %51 {offsets = [0, 0], sizes = [8, 32], strides = [1, 1]} : vector<8x128xf32> to vector<8x32xf32>
    %53 = vector.extract_strided_slice %51 {offsets = [0, 32], sizes = [8, 32], strides = [1, 1]} : vector<8x128xf32> to vector<8x32xf32>
    %54 = vector.extract_strided_slice %51 {offsets = [0, 64], sizes = [8, 32], strides = [1, 1]} : vector<8x128xf32> to vector<8x32xf32>
    %55 = vector.extract_strided_slice %51 {offsets = [0, 96], sizes = [8, 32], strides = [1, 1]} : vector<8x128xf32> to vector<8x32xf32>
    %56 = arith.mulf %53, %35 : vector<8x32xf32>
    %57 = arith.mulf %52, %54 : vector<8x32xf32>
    %58 = arith.addf %56, %57 : vector<8x32xf32>
    %59 = math.tanh %58 : vector<8x32xf32>
    %60 = arith.mulf %55, %59 : vector<8x32xf32>
    %cst_27 = arith.constant 0.000000e+00 : f32
    %61 = vector.broadcast %cst_27 : f32 to vector<8x32xf32>
    %62 = arith.maximumf %60, %61 : vector<8x32xf32>
    %c0_28 = arith.constant 0 : index
    %c128 = arith.constant 128 : index
    %63 = vector.load %arg11[%c0_28, %c128] : memref<8x1024xf32, #tpu.memory_space<vmem>>, vector<8x32xf32>
    tpu.vector_store %arg11[%c0_28, %c128], %62 {strides = array<i32>} : memref<8x1024xf32, #tpu.memory_space<vmem>>, vector<8x32xf32>,
    %c16 = arith.constant 16 : index
    %c0_29 = arith.constant 0 : index
    %64 = vector.load %arg10[%c16, %c0_29] : memref<64x128xf32, #tpu.memory_space<vmem>>, vector<8x128xf32>
    %c0_30 = arith.constant 0 : index
    %c0_31 = arith.constant 0 : index
    %65 = vector.load %arg3[%c0_30, %c0_31] : memref<32x128xf32, #tpu.memory_space<vmem>>, vector<32x128xf32>
    %cst_32 = arith.constant dense<0.000000e+00> : vector<8x128xf32>
    %66 = tpu.matmul %60, %65, %cst_32 {dimension_numbers = #tpu.dot_dimension_numbers<[1], [0], [0], [1], [0, 0, 1, 1], [], []>} : vector<8x32xf32>, vector<32x128xf32>, vector<8x128xf32> -> vector<8x128xf32>
    %67 = arith.addf %64, %66 : vector<8x128xf32>
    %68 = arith.negf %67 : vector<8x128xf32>
    %69 = math.exp %68 : vector<8x128xf32>
    %cst_33 = arith.constant 1.000000e+00 : f32
    %70 = vector.broadcast %cst_33 : f32 to vector<8x128xf32>
    %71 = arith.addf %70, %69 : vector<8x128xf32>
    %72 = arith.divf %70, %71 : vector<8x128xf32>
    %73 = math.tanh %67 : vector<8x128xf32>
    %74 = arith.select %17, %73, %72 : vector<8x128xi1>, vector<8x128xf32>
    %75 = vector.extract_strided_slice %74 {offsets = [0, 0], sizes = [8, 32], strides = [1, 1]} : vector<8x128xf32> to vector<8x32xf32>
    %76 = vector.extract_strided_slice %74 {offsets = [0, 32], sizes = [8, 32], strides = [1, 1]} : vector<8x128xf32> to vector<8x32xf32>
    %77 = vector.extract_strided_slice %74 {offsets = [0, 64], sizes = [8, 32], strides = [1, 1]} : vector<8x128xf32> to vector<8x32xf32>
    %78 = vector.extract_strided_slice %74 {offsets = [0, 96], sizes = [8, 32], strides = [1, 1]} : vector<8x128xf32> to vector<8x32xf32>
    %79 = arith.mulf %76, %58 : vector<8x32xf32>
    %80 = arith.mulf %75, %77 : vector<8x32xf32>
    %81 = arith.addf %79, %80 : vector<8x32xf32>
    %82 = math.tanh %81 : vector<8x32xf32>
    %83 = arith.mulf %78, %82 : vector<8x32xf32>
    %cst_34 = arith.constant 0.000000e+00 : f32
    %84 = vector.broadcast %cst_34 : f32 to vector<8x32xf32>
    %85 = arith.maximumf %83, %84 : vector<8x32xf32>
    %c0_35 = arith.constant 0 : index
    %c256 = arith.constant 256 : index
    %86 = vector.load %arg11[%c0_35, %c256] : memref<8x1024xf32, #tpu.memory_space<vmem>>, vector<8x32xf32>
    tpu.vector_store %arg11[%c0_35, %c256], %85 {strides = array<i32>} : memref<8x1024xf32, #tpu.memory_space<vmem>>, vector<8x32xf32>,
    %c24 = arith.constant 24 : index
    %c0_36 = arith.constant 0 : index
    %87 = vector.load %arg10[%c24, %c0_36] : memref<64x128xf32, #tpu.memory_space<vmem>>, vector<8x128xf32>
    %c0_37 = arith.constant 0 : index
    %c0_38 = arith.constant 0 : index
    %88 = vector.load %arg3[%c0_37, %c0_38] : memref<32x128xf32, #tpu.memory_space<vmem>>, vector<32x128xf32>
    %cst_39 = arith.constant dense<0.000000e+00> : vector<8x128xf32>
    %89 = tpu.matmul %83, %88, %cst_39 {dimension_numbers = #tpu.dot_dimension_numbers<[1], [0], [0], [1], [0, 0, 1, 1], [], []>} : vector<8x32xf32>, vector<32x128xf32>, vector<8x128xf32> -> vector<8x128xf32>
    %90 = arith.addf %87, %89 : vector<8x128xf32>
    %91 = arith.negf %90 : vector<8x128xf32>
    %92 = math.exp %91 : vector<8x128xf32>
    %cst_40 = arith.constant 1.000000e+00 : f32
    %93 = vector.broadcast %cst_40 : f32 to vector<8x128xf32>
    %94 = arith.addf %93, %92 : vector<8x128xf32>
    %95 = arith.divf %93, %94 : vector<8x128xf32>
    %96 = math.tanh %90 : vector<8x128xf32>
    %97 = arith.select %17, %96, %95 : vector<8x128xi1>, vector<8x128xf32>
    %98 = vector.extract_strided_slice %97 {offsets = [0, 0], sizes = [8, 32], strides = [1, 1]} : vector<8x128xf32> to vector<8x32xf32>
    %99 = vector.extract_strided_slice %97 {offsets = [0, 32], sizes = [8, 32], strides = [1, 1]} : vector<8x128xf32> to vector<8x32xf32>
    %100 = vector.extract_strided_slice %97 {offsets = [0, 64], sizes = [8, 32], strides = [1, 1]} : vector<8x128xf32> to vector<8x32xf32>
    %101 = vector.extract_strided_slice %97 {offsets = [0, 96], sizes = [8, 32], strides = [1, 1]} : vector<8x128xf32> to vector<8x32xf32>
    %102 = arith.mulf %99, %81 : vector<8x32xf32>
    %103 = arith.mulf %98, %100 : vector<8x32xf32>
    %104 = arith.addf %102, %103 : vector<8x32xf32>
    %105 = math.tanh %104 : vector<8x32xf32>
    %106 = arith.mulf %101, %105 : vector<8x32xf32>
    %cst_41 = arith.constant 0.000000e+00 : f32
    %107 = vector.broadcast %cst_41 : f32 to vector<8x32xf32>
    %108 = arith.maximumf %106, %107 : vector<8x32xf32>
    %c0_42 = arith.constant 0 : index
    %c384 = arith.constant 384 : index
    %109 = vector.load %arg11[%c0_42, %c384] : memref<8x1024xf32, #tpu.memory_space<vmem>>, vector<8x32xf32>
    tpu.vector_store %arg11[%c0_42, %c384], %108 {strides = array<i32>} : memref<8x1024xf32, #tpu.memory_space<vmem>>, vector<8x32xf32>,
    %c32 = arith.constant 32 : index
    %c0_43 = arith.constant 0 : index
    %110 = vector.load %arg10[%c32, %c0_43] : memref<64x128xf32, #tpu.memory_space<vmem>>, vector<8x128xf32>
    %c0_44 = arith.constant 0 : index
    %c0_45 = arith.constant 0 : index
    %111 = vector.load %arg3[%c0_44, %c0_45] : memref<32x128xf32, #tpu.memory_space<vmem>>, vector<32x128xf32>
    %cst_46 = arith.constant dense<0.000000e+00> : vector<8x128xf32>
    %112 = tpu.matmul %106, %111, %cst_46 {dimension_numbers = #tpu.dot_dimension_numbers<[1], [0], [0], [1], [0, 0, 1, 1], [], []>} : vector<8x32xf32>, vector<32x128xf32>, vector<8x128xf32> -> vector<8x128xf32>
    %113 = arith.addf %110, %112 : vector<8x128xf32>
    %114 = arith.negf %113 : vector<8x128xf32>
    %115 = math.exp %114 : vector<8x128xf32>
    %cst_47 = arith.constant 1.000000e+00 : f32
    %116 = vector.broadcast %cst_47 : f32 to vector<8x128xf32>
    %117 = arith.addf %116, %115 : vector<8x128xf32>
    %118 = arith.divf %116, %117 : vector<8x128xf32>
    %119 = math.tanh %113 : vector<8x128xf32>
    %120 = arith.select %17, %119, %118 : vector<8x128xi1>, vector<8x128xf32>
    %121 = vector.extract_strided_slice %120 {offsets = [0, 0], sizes = [8, 32], strides = [1, 1]} : vector<8x128xf32> to vector<8x32xf32>
    %122 = vector.extract_strided_slice %120 {offsets = [0, 32], sizes = [8, 32], strides = [1, 1]} : vector<8x128xf32> to vector<8x32xf32>
    %123 = vector.extract_strided_slice %120 {offsets = [0, 64], sizes = [8, 32], strides = [1, 1]} : vector<8x128xf32> to vector<8x32xf32>
    %124 = vector.extract_strided_slice %120 {offsets = [0, 96], sizes = [8, 32], strides = [1, 1]} : vector<8x128xf32> to vector<8x32xf32>
    %125 = arith.mulf %122, %104 : vector<8x32xf32>
    %126 = arith.mulf %121, %123 : vector<8x32xf32>
    %127 = arith.addf %125, %126 : vector<8x32xf32>
    %128 = math.tanh %127 : vector<8x32xf32>
    %129 = arith.mulf %124, %128 : vector<8x32xf32>
    %cst_48 = arith.constant 0.000000e+00 : f32
    %130 = vector.broadcast %cst_48 : f32 to vector<8x32xf32>
    %131 = arith.maximumf %129, %130 : vector<8x32xf32>
    %c0_49 = arith.constant 0 : index
    %c512 = arith.constant 512 : index
    %132 = vector.load %arg11[%c0_49, %c512] : memref<8x1024xf32, #tpu.memory_space<vmem>>, vector<8x32xf32>
    tpu.vector_store %arg11[%c0_49, %c512], %131 {strides = array<i32>} : memref<8x1024xf32, #tpu.memory_space<vmem>>, vector<8x32xf32>,
    %c40 = arith.constant 40 : index
    %c0_50 = arith.constant 0 : index
    %133 = vector.load %arg10[%c40, %c0_50] : memref<64x128xf32, #tpu.memory_space<vmem>>, vector<8x128xf32>
    %c0_51 = arith.constant 0 : index
    %c0_52 = arith.constant 0 : index
    %134 = vector.load %arg3[%c0_51, %c0_52] : memref<32x128xf32, #tpu.memory_space<vmem>>, vector<32x128xf32>
    %cst_53 = arith.constant dense<0.000000e+00> : vector<8x128xf32>
    %135 = tpu.matmul %129, %134, %cst_53 {dimension_numbers = #tpu.dot_dimension_numbers<[1], [0], [0], [1], [0, 0, 1, 1], [], []>} : vector<8x32xf32>, vector<32x128xf32>, vector<8x128xf32> -> vector<8x128xf32>
    %136 = arith.addf %133, %135 : vector<8x128xf32>
    %137 = arith.negf %136 : vector<8x128xf32>
    %138 = math.exp %137 : vector<8x128xf32>
    %cst_54 = arith.constant 1.000000e+00 : f32
    %139 = vector.broadcast %cst_54 : f32 to vector<8x128xf32>
    %140 = arith.addf %139, %138 : vector<8x128xf32>
    %141 = arith.divf %139, %140 : vector<8x128xf32>
    %142 = math.tanh %136 : vector<8x128xf32>
    %143 = arith.select %17, %142, %141 : vector<8x128xi1>, vector<8x128xf32>
    %144 = vector.extract_strided_slice %143 {offsets = [0, 0], sizes = [8, 32], strides = [1, 1]} : vector<8x128xf32> to vector<8x32xf32>
    %145 = vector.extract_strided_slice %143 {offsets = [0, 32], sizes = [8, 32], strides = [1, 1]} : vector<8x128xf32> to vector<8x32xf32>
    %146 = vector.extract_strided_slice %143 {offsets = [0, 64], sizes = [8, 32], strides = [1, 1]} : vector<8x128xf32> to vector<8x32xf32>
    %147 = vector.extract_strided_slice %143 {offsets = [0, 96], sizes = [8, 32], strides = [1, 1]} : vector<8x128xf32> to vector<8x32xf32>
    %148 = arith.mulf %145, %127 : vector<8x32xf32>
    %149 = arith.mulf %144, %146 : vector<8x32xf32>
    %150 = arith.addf %148, %149 : vector<8x32xf32>
    %151 = math.tanh %150 : vector<8x32xf32>
    %152 = arith.mulf %147, %151 : vector<8x32xf32>
    %cst_55 = arith.constant 0.000000e+00 : f32
    %153 = vector.broadcast %cst_55 : f32 to vector<8x32xf32>
    %154 = arith.maximumf %152, %153 : vector<8x32xf32>
    %c0_56 = arith.constant 0 : index
    %c640 = arith.constant 640 : index
    %155 = vector.load %arg11[%c0_56, %c640] : memref<8x1024xf32, #tpu.memory_space<vmem>>, vector<8x32xf32>
    tpu.vector_store %arg11[%c0_56, %c640], %154 {strides = array<i32>} : memref<8x1024xf32, #tpu.memory_space<vmem>>, vector<8x32xf32>,
    %c48 = arith.constant 48 : index
    %c0_57 = arith.constant 0 : index
    %156 = vector.load %arg10[%c48, %c0_57] : memref<64x128xf32, #tpu.memory_space<vmem>>, vector<8x128xf32>
    %c0_58 = arith.constant 0 : index
    %c0_59 = arith.constant 0 : index
    %157 = vector.load %arg3[%c0_58, %c0_59] : memref<32x128xf32, #tpu.memory_space<vmem>>, vector<32x128xf32>
    %cst_60 = arith.constant dense<0.000000e+00> : vector<8x128xf32>
    %158 = tpu.matmul %152, %157, %cst_60 {dimension_numbers = #tpu.dot_dimension_numbers<[1], [0], [0], [1], [0, 0, 1, 1], [], []>} : vector<8x32xf32>, vector<32x128xf32>, vector<8x128xf32> -> vector<8x128xf32>
    %159 = arith.addf %156, %158 : vector<8x128xf32>
    %160 = arith.negf %159 : vector<8x128xf32>
    %161 = math.exp %160 : vector<8x128xf32>
    %cst_61 = arith.constant 1.000000e+00 : f32
    %162 = vector.broadcast %cst_61 : f32 to vector<8x128xf32>
    %163 = arith.addf %162, %161 : vector<8x128xf32>
    %164 = arith.divf %162, %163 : vector<8x128xf32>
    %165 = math.tanh %159 : vector<8x128xf32>
    %166 = arith.select %17, %165, %164 : vector<8x128xi1>, vector<8x128xf32>
    %167 = vector.extract_strided_slice %166 {offsets = [0, 0], sizes = [8, 32], strides = [1, 1]} : vector<8x128xf32> to vector<8x32xf32>
    %168 = vector.extract_strided_slice %166 {offsets = [0, 32], sizes = [8, 32], strides = [1, 1]} : vector<8x128xf32> to vector<8x32xf32>
    %169 = vector.extract_strided_slice %166 {offsets = [0, 64], sizes = [8, 32], strides = [1, 1]} : vector<8x128xf32> to vector<8x32xf32>
    %170 = vector.extract_strided_slice %166 {offsets = [0, 96], sizes = [8, 32], strides = [1, 1]} : vector<8x128xf32> to vector<8x32xf32>
    %171 = arith.mulf %168, %150 : vector<8x32xf32>
    %172 = arith.mulf %167, %169 : vector<8x32xf32>
    %173 = arith.addf %171, %172 : vector<8x32xf32>
    %174 = math.tanh %173 : vector<8x32xf32>
    %175 = arith.mulf %170, %174 : vector<8x32xf32>
    %cst_62 = arith.constant 0.000000e+00 : f32
    %176 = vector.broadcast %cst_62 : f32 to vector<8x32xf32>
    %177 = arith.maximumf %175, %176 : vector<8x32xf32>
    %c0_63 = arith.constant 0 : index
    %c768 = arith.constant 768 : index
    %178 = vector.load %arg11[%c0_63, %c768] : memref<8x1024xf32, #tpu.memory_space<vmem>>, vector<8x32xf32>
    tpu.vector_store %arg11[%c0_63, %c768], %177 {strides = array<i32>} : memref<8x1024xf32, #tpu.memory_space<vmem>>, vector<8x32xf32>,
    %c56 = arith.constant 56 : index
    %c0_64 = arith.constant 0 : index
    %179 = vector.load %arg10[%c56, %c0_64] : memref<64x128xf32, #tpu.memory_space<vmem>>, vector<8x128xf32>
    %c0_65 = arith.constant 0 : index
    %c0_66 = arith.constant 0 : index
    %180 = vector.load %arg3[%c0_65, %c0_66] : memref<32x128xf32, #tpu.memory_space<vmem>>, vector<32x128xf32>
    %cst_67 = arith.constant dense<0.000000e+00> : vector<8x128xf32>
    %181 = tpu.matmul %175, %180, %cst_67 {dimension_numbers = #tpu.dot_dimension_numbers<[1], [0], [0], [1], [0, 0, 1, 1], [], []>} : vector<8x32xf32>, vector<32x128xf32>, vector<8x128xf32> -> vector<8x128xf32>
    %182 = arith.addf %179, %181 : vector<8x128xf32>
    %183 = arith.negf %182 : vector<8x128xf32>
    %184 = math.exp %183 : vector<8x128xf32>
    %cst_68 = arith.constant 1.000000e+00 : f32
    %185 = vector.broadcast %cst_68 : f32 to vector<8x128xf32>
    %186 = arith.addf %185, %184 : vector<8x128xf32>
    %187 = arith.divf %185, %186 : vector<8x128xf32>
    %188 = math.tanh %182 : vector<8x128xf32>
    %189 = arith.select %17, %188, %187 : vector<8x128xi1>, vector<8x128xf32>
    %190 = vector.extract_strided_slice %189 {offsets = [0, 0], sizes = [8, 32], strides = [1, 1]} : vector<8x128xf32> to vector<8x32xf32>
    %191 = vector.extract_strided_slice %189 {offsets = [0, 32], sizes = [8, 32], strides = [1, 1]} : vector<8x128xf32> to vector<8x32xf32>
    %192 = vector.extract_strided_slice %189 {offsets = [0, 64], sizes = [8, 32], strides = [1, 1]} : vector<8x128xf32> to vector<8x32xf32>
    %193 = vector.extract_strided_slice %189 {offsets = [0, 96], sizes = [8, 32], strides = [1, 1]} : vector<8x128xf32> to vector<8x32xf32>
    %194 = arith.mulf %191, %173 : vector<8x32xf32>
    %195 = arith.mulf %190, %192 : vector<8x32xf32>
    %196 = arith.addf %194, %195 : vector<8x32xf32>
    %197 = math.tanh %196 : vector<8x32xf32>
    %198 = arith.mulf %193, %197 : vector<8x32xf32>
    %cst_69 = arith.constant 0.000000e+00 : f32
    %199 = vector.broadcast %cst_69 : f32 to vector<8x32xf32>
    %200 = arith.maximumf %198, %199 : vector<8x32xf32>
    %c0_70 = arith.constant 0 : index
    %c896 = arith.constant 896 : index
    %201 = vector.load %arg11[%c0_70, %c896] : memref<8x1024xf32, #tpu.memory_space<vmem>>, vector<8x32xf32>
    tpu.vector_store %arg11[%c0_70, %c896], %200 {strides = array<i32>} : memref<8x1024xf32, #tpu.memory_space<vmem>>, vector<8x32xf32>,
    %c0_71 = arith.constant 0 : index
    %c0_72 = arith.constant 0 : index
    %202 = vector.load %arg11[%c0_71, %c0_72] : memref<8x1024xf32, #tpu.memory_space<vmem>>, vector<8x1024xf32>
    %c0_73 = arith.constant 0 : index
    %c0_74 = arith.constant 0 : index
    %203 = vector.load %arg5[%c0_73, %c0_74] : memref<1024x128xf32, #tpu.memory_space<vmem>>, vector<1024x128xf32>
    %cst_75 = arith.constant dense<0.000000e+00> : vector<8x128xf32>
    %204 = tpu.matmul %202, %203, %cst_75 {dimension_numbers = #tpu.dot_dimension_numbers<[1], [0], [0], [1], [0, 0, 1, 1], [], []>} : vector<8x1024xf32>, vector<1024x128xf32>, vector<8x128xf32> -> vector<8x128xf32>
    %c0_76 = arith.constant 0 : index
    %c0_77 = arith.constant 0 : index
    %205 = vector.load %arg6[%c0_76, %c0_77] : memref<1x128xf32, #tpu.memory_space<vmem>>, vector<1x128xf32>
    %206 = vector.broadcast %205 : vector<1x128xf32> to vector<8x128xf32>
    %207 = arith.addf %204, %206 : vector<8x128xf32>
    %c0_78 = arith.constant 0 : index
    %c0_79 = arith.constant 0 : index
    %208 = vector.load %arg7[%c0_78, %c0_79] : memref<128x128xf32, #tpu.memory_space<vmem>>, vector<128x128xf32>
    %cst_80 = arith.constant dense<0.000000e+00> : vector<8x128xf32>
    %209 = tpu.matmul %207, %208, %cst_80 {dimension_numbers = #tpu.dot_dimension_numbers<[1], [0], [0], [1], [0, 0, 1, 1], [], []>} : vector<8x128xf32>, vector<128x128xf32>, vector<8x128xf32> -> vector<8x128xf32>
    %c0_81 = arith.constant 0 : index
    %c0_82 = arith.constant 0 : index
    %210 = vector.load %arg8[%c0_81, %c0_82] : memref<1x128xf32, #tpu.memory_space<vmem>>, vector<1x128xf32>
    %211 = vector.broadcast %210 : vector<1x128xf32> to vector<8x128xf32>
    %212 = arith.addf %209, %211 : vector<8x128xf32>
    %213 = tpu.iota {dimensions = array<i32: 1>} : vector<8x128xi32>
    %c8_i32 = arith.constant 8 : i32
    %214 = vector.broadcast %c8_i32 : i32 to vector<8x128xi32>
    %215 = arith.cmpi slt, %213, %214 : vector<8x128xi32>
    %cst_83 = arith.constant 0xFF800000 : f32
    %216 = vector.broadcast %cst_83 : f32 to vector<8x128xf32>
    %217 = arith.select %215, %212, %216 : vector<8x128xi1>, vector<8x128xf32>
    %cst_84 = arith.constant dense<0xFF800000> : vector<8xf32>
    %218 = vector.multi_reduction <maximumf>, %217, %cst_84 [1] : vector<8x128xf32> to vector<8xf32>
    %219 = vector.shape_cast %218 : vector<8xf32> to vector<8x1xf32>
    %220 = vector.broadcast %219 : vector<8x1xf32> to vector<8x128xf32>
    %221 = arith.subf %217, %220 : vector<8x128xf32>
    %222 = math.exp %221 : vector<8x128xf32>
    %cst_85 = arith.constant dense<0.000000e+00> : vector<8xf32>
    %223 = vector.multi_reduction <add>, %222, %cst_85 [1] : vector<8x128xf32> to vector<8xf32>
    %224 = vector.shape_cast %223 : vector<8xf32> to vector<8x1xf32>
    %225 = tpu.reciprocal %224 : vector<8x1xf32> -> vector<8x1xf32>
    %226 = vector.broadcast %225 : vector<8x1xf32> to vector<8x128xf32>
    %227 = arith.mulf %222, %226 : vector<8x128xf32>
    %c0_86 = arith.constant 0 : index
    %c0_87 = arith.constant 0 : index
    %228 = vector.load %arg9[%c0_86, %c0_87] : memref<8x128xf32, #tpu.memory_space<vmem>>, vector<8x128xf32>
    tpu.vector_store %arg9[%c0_86, %c0_87], %227 {strides = array<i32>} : memref<8x128xf32, #tpu.memory_space<vmem>>, vector<8x128xf32>,
    return
  }
  func.func @transform_0(%arg0: i32) -> (i32, i32, i32) {
    %c0_i32 = arith.constant 0 : i32
    %c0_i32_0 = arith.constant 0 : i32
    %c0_i32_1 = arith.constant 0 : i32
    return %arg0, %c0_i32, %c0_i32_0 : i32, i32, i32
  }
  func.func @transform_1(%arg0: i32) -> (i32, i32) {
    %c0_i32 = arith.constant 0 : i32
    %c0_i32_0 = arith.constant 0 : i32
    %c0_i32_1 = arith.constant 0 : i32
    return %c0_i32, %c0_i32_0 : i32, i32
  }
  func.func @transform_2(%arg0: i32) -> (i32, i32) {
    %c0_i32 = arith.constant 0 : i32
    %c0_i32_0 = arith.constant 0 : i32
    %c0_i32_1 = arith.constant 0 : i32
    return %c0_i32, %c0_i32_0 : i32, i32
  }
  func.func @transform_3(%arg0: i32) -> (i32, i32) {
    %c0_i32 = arith.constant 0 : i32
    %c0_i32_0 = arith.constant 0 : i32
    %c0_i32_1 = arith.constant 0 : i32
    return %c0_i32, %c0_i32_0 : i32, i32
  }
  func.func @transform_4(%arg0: i32) -> (i32, i32) {
    %c0_i32 = arith.constant 0 : i32
    %c0_i32_0 = arith.constant 0 : i32
    %c0_i32_1 = arith.constant 0 : i32
    return %c0_i32, %c0_i32_0 : i32, i32
  }
  func.func @transform_5(%arg0: i32) -> (i32, i32) {
    %c0_i32 = arith.constant 0 : i32
    %c0_i32_0 = arith.constant 0 : i32
    %c0_i32_1 = arith.constant 0 : i32
    return %c0_i32, %c0_i32_0 : i32, i32
  }
  func.func @transform_6(%arg0: i32) -> (i32, i32) {
    %c0_i32 = arith.constant 0 : i32
    %c0_i32_0 = arith.constant 0 : i32
    %c0_i32_1 = arith.constant 0 : i32
    return %c0_i32, %c0_i32_0 : i32, i32
  }
  func.func @transform_7(%arg0: i32) -> (i32, i32) {
    %c0_i32 = arith.constant 0 : i32
    %c0_i32_0 = arith.constant 0 : i32
    %c0_i32_1 = arith.constant 0 : i32
    return %c0_i32, %c0_i32_0 : i32, i32
  }
  func.func @transform_8(%arg0: i32) -> (i32, i32) {
    %c0_i32 = arith.constant 0 : i32
    %c0_i32_0 = arith.constant 0 : i32
    return %arg0, %c0_i32 : i32, i32
  }
}

</mosaic_0001>

<llo_original>
// kernel: tpu_custom_call.1
$region0: #{tpu_custom_call.1}
  #allocation0 [shape = 'u32[]', space=smem, size = 0x4, offset = 0x4, fixed_abs, tag = 'smem constant byte address 0x4 - core index']
  #allocation1 [shape = 'u32[144,128]{1,0:T(1,128)}', space=vmem, size = 0x12000, scoped, tag = 'internal scratch']
  #allocation2 [shape = 'f32[64,128]{1,0:T(8,128)}', space=vmem, size = 0x8000, scoped, tag = 'scratch operand']
  #allocation3 [shape = 'f32[8,1024]{1,0:T(8,128)}', space=vmem, size = 0x8000, scoped, tag = 'scratch operand']
  %s0 = inlined_call_operand.vmem [shape: f32[1,64,16], index: 0, kind: input, shape index: {}]
  %s1 = inlined_call_operand.vmem [shape: f32[16,128], index: 1, kind: input, shape index: {}]
  %s2 = inlined_call_operand.vmem [shape: f32[32,128], index: 2, kind: input, shape index: {}]
  %s3 = inlined_call_operand.vmem [shape: f32[1,128], index: 3, kind: input, shape index: {}]
  %s4 = inlined_call_operand.hbm [shape: f32[1024,128], index: 4, kind: input, shape index: {}]
  %s5 = inlined_call_operand.vmem [shape: f32[1,128], index: 5, kind: input, shape index: {}]
  %s6 = inlined_call_operand.hbm [shape: f32[128,128], index: 6, kind: input, shape index: {}]
  %s7 = inlined_call_operand.vmem [shape: f32[1,128], index: 7, kind: input, shape index: {}]
  %s8 = inlined_call_operand.hbm [shape: f32[8,128], index: 8, kind: output, shape index: {}]
  %s9 = sld [smem:[#allocation0]]
  $region50: #{tpu_custom_call.1} parent=0
    _
  %s11 = ssub.s32 1, %s9
  %s12 = scalar_select 0, %s11, %s9
  $region1: #{tpu_custom_call.1} parent=0
    #allocation4 [shape = 'u8[524288]{0}', space=vmem, size = 0x80000, scoped, tag = 'input window, operand 4, single buffered']
    #allocation5 [shape = 's32[1]{0}', space=sflag, size = 0x4, scoped, tag = 'scoped memory for tpu_custom_call.1']
    #allocation6 [shape = 's32[1]{0}', space=sflag, size = 0x4, scoped, tag = 'scoped memory for tpu_custom_call.1']
    #allocation7 [shape = 'u8[65536]{0}', space=vmem, size = 0x10000, scoped, tag = 'input window, operand 6, single buffered']
    #allocation8 [shape = 's32[1]{0}', space=sflag, size = 0x4, scoped, tag = 'scoped memory for tpu_custom_call.1']
    #allocation9 [shape = 'u8[4096]{0}', space=vmem, size = 0x1000, scoped, tag = 'output window, operand 0, single buffered']
    %13 = vsyncpa [#allocation5], 0
    %14 = vsyncpa [#allocation8], 0
    %15 = vsyncpa [#allocation6], 0
    // Predicated region
    $region2: #{tpu_custom_call.1} parent=1 // pred_check
      _
    $region3: #{tpu_custom_call.1} parent=1 // pred_check_branch
      %17 = sbr.rel (0) target = $region5
    $region4: #{tpu_custom_call.1} parent=1 // pred_region
      _
    $region5: #{tpu_custom_call.1} parent=1 // pred_fallthru
      _
    // Predicated region
    $region6: #{tpu_custom_call.1} parent=1 // pred_check
      _
    $region7: #{tpu_custom_call.1} parent=1 // pred_check_branch
      %19 = sbr.rel (0) target = $region9
    $region8: #{tpu_custom_call.1} parent=1 // pred_region
      _
    $region9: #{tpu_custom_call.1} parent=1 // pred_fallthru
      _
    // Predicated region
    $region10: #{tpu_custom_call.1} parent=1 // pred_check
      _
    $region11: #{tpu_custom_call.1} parent=1 // pred_check_branch
      %21 = sbr.rel (0) target = $region13
    $region12: #{tpu_custom_call.1} parent=1 // pred_region
      _
    $region13: #{tpu_custom_call.1} parent=1 // pred_fallthru
      _
    // Predicated region
    $region14: #{tpu_custom_call.1} parent=1 // pred_check
      _
    $region15: #{tpu_custom_call.1} parent=1 // pred_check_branch
      %23 = sbr.rel (0) target = $region17
    $region16: #{tpu_custom_call.1} parent=1 // pred_region
      _
    $region17: #{tpu_custom_call.1} parent=1 // pred_fallthru
      _
    // Predicated region
    $region18: #{tpu_custom_call.1} parent=1 // pred_check
      _
    $region19: #{tpu_custom_call.1} parent=1 // pred_check_branch
      %25 = sbr.rel (0) target = $region21
    $region20: #{tpu_custom_call.1} parent=1 // pred_region
      %s27 = ssub.s32 16384, 16384
      %28 = vsyncadd [#allocation5], %s27
      %s29 = sshll.u32 [#allocation4], 4
      %s30 = int_to_ptr.vmem [resolvable:$true] %s29
      %35 = dma.hbm_to_vmem [thread:$0]  %s4, 16384, %s30, [#allocation5], 128, 128, 8
    $region21: #{tpu_custom_call.1} parent=1 // pred_fallthru
      _
    // Predicated region
    $region22: #{tpu_custom_call.1} parent=1 // pred_check
      _
    $region23: #{tpu_custom_call.1} parent=1 // pred_check_branch
      %37 = sbr.rel (0) target = $region25
    $region24: #{tpu_custom_call.1} parent=1 // pred_region
      _
    $region25: #{tpu_custom_call.1} parent=1 // pred_fallthru
      _
    // Predicated region
    $region26: #{tpu_custom_call.1} parent=1 // pred_check
      _
    $region27: #{tpu_custom_call.1} parent=1 // pred_check_branch
      %39 = sbr.rel (0) target = $region29
    $region28: #{tpu_custom_call.1} parent=1 // pred_region
      %s41 = ssub.s32 2048, 2048
      %42 = vsyncadd [#allocation8], %s41
      %s43 = sshll.u32 [#allocation7], 4
      %s44 = int_to_ptr.vmem [resolvable:$true] %s43
      %49 = dma.hbm_to_vmem [thread:$0]  %s6, 2048, %s44, [#allocation8], 128, 128, 8
    $region29: #{tpu_custom_call.1} parent=1 // pred_fallthru
      _
    // Predicated region
    $region30: #{tpu_custom_call.1} parent=1 // pred_check
      _
    $region31: #{tpu_custom_call.1} parent=1 // pred_check_branch
      %51 = sbr.rel (0) target = $region33
    $region32: #{tpu_custom_call.1} parent=1 // pred_region
      _
    $region33: #{tpu_custom_call.1} parent=1 // pred_fallthru
      _
    // Predicated region
    $region34: #{tpu_custom_call.1} parent=1 // pred_check
      _
    $region35: #{tpu_custom_call.1} parent=1 // pred_check_branch
      %53 = sbr.rel (0) target = $region37
    $region36: #{tpu_custom_call.1} parent=1 // pred_region
      %54 = dma.done [#allocation5], 16384
    $region37: #{tpu_custom_call.1} parent=1 // pred_fallthru
      _
    // Predicated region
    $region38: #{tpu_custom_call.1} parent=1 // pred_check
      _
    $region39: #{tpu_custom_call.1} parent=1 // pred_check_branch
      %56 = sbr.rel (0) target = $region41
    $region40: #{tpu_custom_call.1} parent=1 // pred_region
      %57 = dma.done [#allocation8], 2048
    $region41: #{tpu_custom_call.1} parent=1 // pred_fallthru
      _
    %v58 = vld [vmem:[%s0] sm:$0xff]
    %v59 = vld [vmem:[%s0 + $0x8] sm:$0xff]
    %v60 = vld [vmem:[%s0 + $0x10] sm:$0xff]
    %v61 = vld [vmem:[%s0 + $0x18] sm:$0xff]
    %v62 = vld [vmem:[%s0 + $0x20] sm:$0xff]
    %v63 = vld [vmem:[%s0 + $0x28] sm:$0xff]
    %v64 = vld [vmem:[%s0 + $0x30] sm:$0xff]
    %v65 = vld [vmem:[%s0 + $0x38] sm:$0xff]
    %v66 = vld [vmem:[%s1] sm:$0xff]
    %v67 = vld [vmem:[%s1 + $0x8] sm:$0xff]
    %v68 = vld [vmem:[%s3] sm:$0x1]
    %v70 = vlaneseq
    %v71 = vshrl.u32 %v70, 7
    %v72 = vsub.s32 0, %v71
    %v73 = vrot.slane %v68, %v72
    %vm75 = vcmask 130048
    %v77 = vsel %vm75, %v58, 0
    %v80 = vsel %vm75, %v59, 0
    %v83 = vsel %vm75, %v60, 0
    %v86 = vsel %vm75, %v61, 0
    %v89 = vsel %vm75, %v62, 0
    %v92 = vsel %vm75, %v63, 0
    %v95 = vsel %vm75, %v64, 0
    %v98 = vsel %vm75, %v65, 0
    %100 = vmatprep.subr.mxu0 0.0
    %101 = vmatpush1.msra.mxu0 %v66
    %102 = vmatprep.subr.mxu0 0.0
    %103 = vmatpush1.msra.mxu0 %v67
    %104 = vmatprep.subr.mxu0 0.0
    %105 = vmatpush1.msra.mxu0 0.0
    %106 = vmatprep.subr.mxu0 0.0
    %107 = vmatpush1.msra.mxu0 0.0
    %108 = vmatprep.subr.mxu0 0.0
    %109 = vmatpush1.msra.mxu0 0.0
    %110 = vmatprep.subr.mxu0 0.0
    %111 = vmatpush1.msra.mxu0 0.0
    %112 = vmatprep.subr.mxu0 0.0
    %113 = vmatpush1.msra.mxu0 0.0
    %114 = vmatprep.subr.mxu0 0.0
    %115 = vmatpush1.msra.mxu0 0.0
    %116 = vmatprep.subr.mxu0 0.0
    %117 = vmatpush1.msra.mxu0 0.0
    %118 = vmatprep.subr.mxu0 0.0
    %119 = vmatpush1.msra.mxu0 0.0
    %120 = vmatprep.subr.mxu0 0.0
    %121 = vmatpush1.msra.mxu0 0.0
    %122 = vmatprep.subr.mxu0 0.0
    %123 = vmatpush1.msra.mxu0 0.0
    %124 = vmatprep.subr.mxu0 0.0
    %125 = vmatpush1.msra.mxu0 0.0
    %126 = vmatprep.subr.mxu0 0.0
    %127 = vmatpush1.msra.mxu0 0.0
    %128 = vmatprep.subr.mxu0 0.0
    %129 = vmatpush1.msra.mxu0 0.0
    %130 = vmatprep.subr.mxu0 0.0
    %131 = vmatpush1.msra.mxu0 0.0
    %132 = vmatprep.subr.mxu0 0.0
    %133 = vmatpush1.msra.mxu0 0.0
    %134 = vmatprep.subr.mxu0 0.0
    %135 = vmatpush1.msra.mxu0 0.0
    %136 = vmatprep.subr.mxu0 0.0
    %137 = vmatpush1.msra.mxu0 0.0
    %138 = vmatprep.subr.mxu0 0.0
    %139 = vmatpush1.msra.mxu0 0.0
    %140 = vmatprep.subr.mxu0 0.0
    %141 = vmatpush1.msra.mxu0 0.0
    %142 = vmatprep.subr.mxu0 0.0
    %143 = vmatpush1.msra.mxu0 0.0
    %144 = vmatprep.subr.mxu0 0.0
    %145 = vmatpush1.msra.mxu0 0.0
    %146 = vmatprep.subr.mxu0 0.0
    %147 = vmatpush1.msra.mxu0 0.0
    %148 = vmatprep.subr.mxu0 0.0
    %149 = vmatpush1.msra.mxu0 0.0
    %150 = vmatprep.subr.mxu0 0.0
    %151 = vmatpush1.msra.mxu0 0.0
    %152 = vmatprep.subr.mxu0 0.0
    %153 = vmatpush1.msra.mxu0 0.0
    %154 = vmatprep.subr.mxu0 0.0
    %155 = vmatpush1.msra.mxu0 0.0
    %156 = vmatprep.subr.mxu0 0.0
    %157 = vmatpush1.msra.mxu0 0.0
    %158 = vmatprep.subr.mxu0 0.0
    %159 = vmatpush1.msra.mxu0 0.0
    %160 = vmatprep.subr.mxu0 0.0
    %161 = vmatpush1.msra.mxu0 0.0
    %162 = vmatprep.subr.mxu0 0.0
    %163 = vmatpush1.msra.mxu0 0.0
    %164 = vmatprep.mubr.f32.mxu0 0.0
    %165 = vmatmul.mubr.f32.gmra.mrb[0].mxu0 %v77
    %v166 = vpop.f32.mrb[0].mxu0
    %v167 = vadd.f32 %v73, %v166
    %v168 = vpop.f32.mrb[0].mxu0
    %169 = vmatprep.mubr.f32.mxu0 0.0
    %170 = vmatmul.mubr.f32.gmra.mrb[0].mxu0 %v80
    %v171 = vpop.f32.mrb[0].mxu0
    %v172 = vadd.f32 %v73, %v171
    %v173 = vpop.f32.mrb[0].mxu0
    %174 = vmatprep.mubr.f32.mxu0 0.0
    %175 = vmatmul.mubr.f32.gmra.mrb[0].mxu0 %v83
    %v176 = vpop.f32.mrb[0].mxu0
    %v177 = vadd.f32 %v73, %v176
    %v178 = vpop.f32.mrb[0].mxu0
    %179 = vmatprep.mubr.f32.mxu0 0.0
    %180 = vmatmul.mubr.f32.gmra.mrb[0].mxu0 %v86
    %v181 = vpop.f32.mrb[0].mxu0
    %v182 = vadd.f32 %v73, %v181
    %v183 = vpop.f32.mrb[0].mxu0
    %184 = vmatprep.mubr.f32.mxu0 0.0
    %185 = vmatmul.mubr.f32.gmra.mrb[0].mxu0 %v89
    %v186 = vpop.f32.mrb[0].mxu0
    %v187 = vadd.f32 %v73, %v186
    %v188 = vpop.f32.mrb[0].mxu0
    %189 = vmatprep.mubr.f32.mxu0 0.0
    %190 = vmatmul.mubr.f32.gmra.mrb[0].mxu0 %v92
    %v191 = vpop.f32.mrb[0].mxu0
    %v192 = vadd.f32 %v73, %v191
    %v193 = vpop.f32.mrb[0].mxu0
    %194 = vmatprep.mubr.f32.mxu0 0.0
    %195 = vmatmul.mubr.f32.gmra.mrb[0].mxu0 %v95
    %v196 = vpop.f32.mrb[0].mxu0
    %v197 = vadd.f32 %v73, %v196
    %v198 = vpop.f32.mrb[0].mxu0
    %199 = vmatprep.mubr.f32.mxu0 0.0
    %200 = vmatmul.mubr.f32.gmra.mrb[0].mxu0 %v98
    %v201 = vpop.f32.mrb[0].mxu0
    %v202 = vadd.f32 %v73, %v201
    %v203 = vpop.f32.mrb[0].mxu0
    %204 = vdwg.mxu0
    %205 = vst [vmem:[#allocation2] sm:$0xff] %v167
    %206 = vst [vmem:[#allocation2 + $0x8] sm:$0xff] %v172
    %207 = vst [vmem:[#allocation2 + $0x10] sm:$0xff] %v177
    %208 = vst [vmem:[#allocation2 + $0x18] sm:$0xff] %v182
    %209 = vst [vmem:[#allocation2 + $0x20] sm:$0xff] %v187
    %210 = vst [vmem:[#allocation2 + $0x28] sm:$0xff] %v192
    %211 = vst [vmem:[#allocation2 + $0x30] sm:$0xff] %v197
    %212 = vst [vmem:[#allocation2 + $0x38] sm:$0xff] %v202
    %213 = vst [vmem:[#allocation3] sm:$0xff] 0.0
    %214 = vst [vmem:[#allocation3 + $0x8] sm:$0xff] 0.0
    %215 = vst [vmem:[#allocation3 + $0x10] sm:$0xff] 0.0
    %216 = vst [vmem:[#allocation3 + $0x18] sm:$0xff] 0.0
    %217 = vst [vmem:[#allocation3 + $0x20] sm:$0xff] 0.0
    %218 = vst [vmem:[#allocation3 + $0x28] sm:$0xff] 0.0
    %219 = vst [vmem:[#allocation3 + $0x30] sm:$0xff] 0.0
    %220 = vst [vmem:[#allocation3 + $0x38] sm:$0xff] 0.0
    %v221 = vlaneseq
    %v222 = vand.u32 %v221, 127
    %vm223 = vcmp.ge.s32.totalorder %v222, 64
    %vm224 = vcmp.lt.s32.totalorder %v222, 96
    %vm225 = vmand %vm223, %vm224
    %v226 = vld [vmem:[#allocation2] sm:$0xff]
    %v227 = vld [vmem:[%s2] sm:$0xff]
    %v228 = vld [vmem:[%s2 + $0x8] sm:$0xff]
    %v229 = vld [vmem:[%s2 + $0x10] sm:$0xff]
    %v230 = vld [vmem:[%s2 + $0x18] sm:$0xff]
    %vm231 = vcmask 261120
    %v233 = vsel %vm231, 0.0, 0
    %235 = vmatprep.subr.mxu0 0.0
    %236 = vmatpush1.msra.mxu0 %v227
    %237 = vmatprep.subr.mxu0 0.0
    %238 = vmatpush1.msra.mxu0 %v228
    %239 = vmatprep.subr.mxu0 0.0
    %240 = vmatpush1.msra.mxu0 %v229
    %241 = vmatprep.subr.mxu0 0.0
    %242 = vmatpush1.msra.mxu0 %v230
    %243 = vmatprep.subr.mxu0 0.0
    %244 = vmatpush1.msra.mxu0 0.0
    %245 = vmatprep.subr.mxu0 0.0
    %246 = vmatpush1.msra.mxu0 0.0
    %247 = vmatprep.subr.mxu0 0.0
    %248 = vmatpush1.msra.mxu0 0.0
    %249 = vmatprep.subr.mxu0 0.0
    %250 = vmatpush1.msra.mxu0 0.0
    %251 = vmatprep.subr.mxu0 0.0
    %252 = vmatpush1.msra.mxu0 0.0
    %253 = vmatprep.subr.mxu0 0.0
    %254 = vmatpush1.msra.mxu0 0.0
    %255 = vmatprep.subr.mxu0 0.0
    %256 = vmatpush1.msra.mxu0 0.0
    %257 = vmatprep.subr.mxu0 0.0
    %258 = vmatpush1.msra.mxu0 0.0
    %259 = vmatprep.subr.mxu0 0.0
    %260 = vmatpush1.msra.mxu0 0.0
    %261 = vmatprep.subr.mxu0 0.0
    %262 = vmatpush1.msra.mxu0 0.0
    %263 = vmatprep.subr.mxu0 0.0
    %264 = vmatpush1.msra.mxu0 0.0
    %265 = vmatprep.subr.mxu0 0.0
    %266 = vmatpush1.msra.mxu0 0.0
    %267 = vmatprep.subr.mxu0 0.0
    %268 = vmatpush1.msra.mxu0 0.0
    %269 = vmatprep.subr.mxu0 0.0
    %270 = vmatpush1.msra.mxu0 0.0
    %271 = vmatprep.subr.mxu0 0.0
    %272 = vmatpush1.msra.mxu0 0.0
    %273 = vmatprep.subr.mxu0 0.0
    %274 = vmatpush1.msra.mxu0 0.0
    %275 = vmatprep.subr.mxu0 0.0
    %276 = vmatpush1.msra.mxu0 0.0
    %277 = vmatprep.subr.mxu0 0.0
    %278 = vmatpush1.msra.mxu0 0.0
    %279 = vmatprep.subr.mxu0 0.0
    %280 = vmatpush1.msra.mxu0 0.0
    %281 = vmatprep.subr.mxu0 0.0
    %282 = vmatpush1.msra.mxu0 0.0
    %283 = vmatprep.subr.mxu0 0.0
    %284 = vmatpush1.msra.mxu0 0.0
    %285 = vmatprep.subr.mxu0 0.0
    %286 = vmatpush1.msra.mxu0 0.0
    %287 = vmatprep.subr.mxu0 0.0
    %288 = vmatpush1.msra.mxu0 0.0
    %289 = vmatprep.subr.mxu0 0.0
    %290 = vmatpush1.msra.mxu0 0.0
    %291 = vmatprep.subr.mxu0 0.0
    %292 = vmatpush1.msra.mxu0 0.0
    %293 = vmatprep.subr.mxu0 0.0
    %294 = vmatpush1.msra.mxu0 0.0
    %295 = vmatprep.subr.mxu0 0.0
    %296 = vmatpush1.msra.mxu0 0.0
    %297 = vmatprep.subr.mxu0 0.0
    %298 = vmatpush1.msra.mxu0 0.0
    %299 = vmatprep.mubr.f32.mxu0 0.0
    %300 = vmatmul.mubr.f32.gmra.mrb[0].mxu0 %v233
    %v301 = vpop.f32.mrb[0].mxu0
    %v302 = vadd.f32 0.0, %v301
    %v303 = vpop.f32.mrb[0].mxu0
    %304 = vdwg.mxu0
    %v305 = vadd.f32 %v226, %v302
    %v306 = vxor.u32 %v305, 2147483648
    %v307 = vmul.f32 %v306, 1.442695
    %v308 = vpow.pop %v307
    %v309 = vadd.f32 %v308, 1.0
    %v310 = vrcp.pop %v309
    %v311 = vmul.f32 1.0, %v310
    %v312 = vtanh.pop %v305
    %v313 = vsel %vm225, %v312, %v311
    %v314 = vmul.f32 %v313, 0.0
    %316 = vrot.lane.b32.xlu0 %v313, 64
    %v317 = vpop.permute.xlu0 %316
    %v319 = vmul.f32 %v313, %v317
    %321 = vrot.lane.b32.xlu0 %v319, 32
    %v322 = vpop.permute.xlu0 %321
    %v324 = vadd.f32 %v314, %v322
    %v325 = vtanh.pop %v324
    %327 = vrot.lane.b32.xlu0 %v325, 64
    %v328 = vpop.permute.xlu0 %327
    %v330 = vmul.f32 %v313, %v328
    %v331 = vmax.f32 %v330, 0.0
    %333 = vrot.lane.b32.xlu0 %v331, 32
    %v334 = vpop.permute.xlu0 %333
    %336 = vst.msk [vmem:[#allocation3] sm:$0xff] %vm231, %v334
    %v337 = vld [vmem:[#allocation2 + $0x8] sm:$0xff]
    %v338 = vld [vmem:[%s2] sm:$0xff]
    %v339 = vld [vmem:[%s2 + $0x8] sm:$0xff]
    %v340 = vld [vmem:[%s2 + $0x10] sm:$0xff]
    %v341 = vld [vmem:[%s2 + $0x18] sm:$0xff]
    %343 = vrot.lane.b32.xlu0 %v330, 32
    %v344 = vpop.permute.xlu0 %343
    %v345 = vsel %vm231, %v344, 0
    %347 = vmatprep.subr.mxu0 0.0
    %348 = vmatpush1.msra.mxu0 %v338
    %349 = vmatprep.subr.mxu0 0.0
    %350 = vmatpush1.msra.mxu0 %v339
    %351 = vmatprep.subr.mxu0 0.0
    %352 = vmatpush1.msra.mxu0 %v340
    %353 = vmatprep.subr.mxu0 0.0
    %354 = vmatpush1.msra.mxu0 %v341
    %355 = vmatprep.subr.mxu0 0.0
    %356 = vmatpush1.msra.mxu0 0.0
    %357 = vmatprep.subr.mxu0 0.0
    %358 = vmatpush1.msra.mxu0 0.0
    %359 = vmatprep.subr.mxu0 0.0
    %360 = vmatpush1.msra.mxu0 0.0
    %361 = vmatprep.subr.mxu0 0.0
    %362 = vmatpush1.msra.mxu0 0.0
    %363 = vmatprep.subr.mxu0 0.0
    %364 = vmatpush1.msra.mxu0 0.0
    %365 = vmatprep.subr.mxu0 0.0
    %366 = vmatpush1.msra.mxu0 0.0
    %367 = vmatprep.subr.mxu0 0.0
    %368 = vmatpush1.msra.mxu0 0.0
    %369 = vmatprep.subr.mxu0 0.0
    %370 = vmatpush1.msra.mxu0 0.0
    %371 = vmatprep.subr.mxu0 0.0
    %372 = vmatpush1.msra.mxu0 0.0
    %373 = vmatprep.subr.mxu0 0.0
    %374 = vmatpush1.msra.mxu0 0.0
    %375 = vmatprep.subr.mxu0 0.0
    %376 = vmatpush1.msra.mxu0 0.0
    %377 = vmatprep.subr.mxu0 0.0
    %378 = vmatpush1.msra.mxu0 0.0
    %379 = vmatprep.subr.mxu0 0.0
    %380 = vmatpush1.msra.mxu0 0.0
    %381 = vmatprep.subr.mxu0 0.0
    %382 = vmatpush1.msra.mxu0 0.0
    %383 = vmatprep.subr.mxu0 0.0
    %384 = vmatpush1.msra.mxu0 0.0
    %385 = vmatprep.subr.mxu0 0.0
    %386 = vmatpush1.msra.mxu0 0.0
    %387 = vmatprep.subr.mxu0 0.0
    %388 = vmatpush1.msra.mxu0 0.0
    %389 = vmatprep.subr.mxu0 0.0
    %390 = vmatpush1.msra.mxu0 0.0
    %391 = vmatprep.subr.mxu0 0.0
    %392 = vmatpush1.msra.mxu0 0.0
    %393 = vmatprep.subr.mxu0 0.0
    %394 = vmatpush1.msra.mxu0 0.0
    %395 = vmatprep.subr.mxu0 0.0
    %396 = vmatpush1.msra.mxu0 0.0
    %397 = vmatprep.subr.mxu0 0.0
    %398 = vmatpush1.msra.mxu0 0.0
    %399 = vmatprep.subr.mxu0 0.0
    %400 = vmatpush1.msra.mxu0 0.0
    %401 = vmatprep.subr.mxu0 0.0
    %402 = vmatpush1.msra.mxu0 0.0
    %403 = vmatprep.subr.mxu0 0.0
    %404 = vmatpush1.msra.mxu0 0.0
    %405 = vmatprep.subr.mxu0 0.0
    %406 = vmatpush1.msra.mxu0 0.0
    %407 = vmatprep.subr.mxu0 0.0
    %408 = vmatpush1.msra.mxu0 0.0
    %409 = vmatprep.subr.mxu0 0.0
    %410 = vmatpush1.msra.mxu0 0.0
    %411 = vmatprep.mubr.f32.mxu0 0.0
    %412 = vmatmul.mubr.f32.gmra.mrb[0].mxu0 %v345
    %v413 = vpop.f32.mrb[0].mxu0
    %v414 = vadd.f32 0.0, %v413
    %v415 = vpop.f32.mrb[0].mxu0
    %416 = vdwg.mxu0
    %v417 = vadd.f32 %v337, %v414
    %v418 = vxor.u32 %v417, 2147483648
    %v419 = vmul.f32 %v418, 1.442695
    %v420 = vpow.pop %v419
    %v421 = vadd.f32 %v420, 1.0
    %v422 = vrcp.pop %v421
    %v423 = vmul.f32 1.0, %v422
    %v424 = vtanh.pop %v417
    %v425 = vsel %vm225, %v424, %v423
    %v426 = vmul.f32 %v425, %v324
    %428 = vrot.lane.b32.xlu0 %v425, 64
    %v429 = vpop.permute.xlu0 %428
    %v431 = vmul.f32 %v425, %v429
    %433 = vrot.lane.b32.xlu0 %v431, 32
    %v434 = vpop.permute.xlu0 %433
    %v436 = vadd.f32 %v426, %v434
    %v437 = vtanh.pop %v436
    %439 = vrot.lane.b32.xlu0 %v437, 64
    %v440 = vpop.permute.xlu0 %439
    %v442 = vmul.f32 %v425, %v440
    %v443 = vmax.f32 %v442, 0.0
    %445 = vrot.lane.b32.xlu0 %v443, 32
    %v446 = vpop.permute.xlu0 %445
    %448 = vst.msk [vmem:[#allocation3 + $0x8] sm:$0xff] %vm231, %v446
    %v449 = vld [vmem:[#allocation2 + $0x10] sm:$0xff]
    %v450 = vld [vmem:[%s2] sm:$0xff]
    %v451 = vld [vmem:[%s2 + $0x8] sm:$0xff]
    %v452 = vld [vmem:[%s2 + $0x10] sm:$0xff]
    %v453 = vld [vmem:[%s2 + $0x18] sm:$0xff]
    %455 = vrot.lane.b32.xlu0 %v442, 32
    %v456 = vpop.permute.xlu0 %455
    %v457 = vsel %vm231, %v456, 0
    %459 = vmatprep.subr.mxu0 0.0
    %460 = vmatpush1.msra.mxu0 %v450
    %461 = vmatprep.subr.mxu0 0.0
    %462 = vmatpush1.msra.mxu0 %v451
    %463 = vmatprep.subr.mxu0 0.0
    %464 = vmatpush1.msra.mxu0 %v452
    %465 = vmatprep.subr.mxu0 0.0
    %466 = vmatpush1.msra.mxu0 %v453
    %467 = vmatprep.subr.mxu0 0.0
    %468 = vmatpush1.msra.mxu0 0.0
    %469 = vmatprep.subr.mxu0 0.0
    %470 = vmatpush1.msra.mxu0 0.0
    %471 = vmatprep.subr.mxu0 0.0
    %472 = vmatpush1.msra.mxu0 0.0
    %473 = vmatprep.subr.mxu0 0.0
    %474 = vmatpush1.msra.mxu0 0.0
    %475 = vmatprep.subr.mxu0 0.0
    %476 = vmatpush1.msra.mxu0 0.0
    %477 = vmatprep.subr.mxu0 0.0
    %478 = vmatpush1.msra.mxu0 0.0
    %479 = vmatprep.subr.mxu0 0.0
    %480 = vmatpush1.msra.mxu0 0.0
    %481 = vmatprep.subr.mxu0 0.0
    %482 = vmatpush1.msra.mxu0 0.0
    %483 = vmatprep.subr.mxu0 0.0
    %484 = vmatpush1.msra.mxu0 0.0
    %485 = vmatprep.subr.mxu0 0.0
    %486 = vmatpush1.msra.mxu0 0.0
    %487 = vmatprep.subr.mxu0 0.0
    %488 = vmatpush1.msra.mxu0 0.0
    %489 = vmatprep.subr.mxu0 0.0
    %490 = vmatpush1.msra.mxu0 0.0
    %491 = vmatprep.subr.mxu0 0.0
    %492 = vmatpush1.msra.mxu0 0.0
    %493 = vmatprep.subr.mxu0 0.0
    %494 = vmatpush1.msra.mxu0 0.0
    %495 = vmatprep.subr.mxu0 0.0
    %496 = vmatpush1.msra.mxu0 0.0
    %497 = vmatprep.subr.mxu0 0.0
    %498 = vmatpush1.msra.mxu0 0.0
    %499 = vmatprep.subr.mxu0 0.0
    %500 = vmatpush1.msra.mxu0 0.0
    %501 = vmatprep.subr.mxu0 0.0
    %502 = vmatpush1.msra.mxu0 0.0
    %503 = vmatprep.subr.mxu0 0.0
    %504 = vmatpush1.msra.mxu0 0.0
    %505 = vmatprep.subr.mxu0 0.0
    %506 = vmatpush1.msra.mxu0 0.0
    %507 = vmatprep.subr.mxu0 0.0
    %508 = vmatpush1.msra.mxu0 0.0
    %509 = vmatprep.subr.mxu0 0.0
    %510 = vmatpush1.msra.mxu0 0.0
    %511 = vmatprep.subr.mxu0 0.0
    %512 = vmatpush1.msra.mxu0 0.0
    %513 = vmatprep.subr.mxu0 0.0
    %514 = vmatpush1.msra.mxu0 0.0
    %515 = vmatprep.subr.mxu0 0.0
    %516 = vmatpush1.msra.mxu0 0.0
    %517 = vmatprep.subr.mxu0 0.0
    %518 = vmatpush1.msra.mxu0 0.0
    %519 = vmatprep.subr.mxu0 0.0
    %520 = vmatpush1.msra.mxu0 0.0
    %521 = vmatprep.subr.mxu0 0.0
    %522 = vmatpush1.msra.mxu0 0.0
    %523 = vmatprep.mubr.f32.mxu0 0.0
    %524 = vmatmul.mubr.f32.gmra.mrb[0].mxu0 %v457
    %v525 = vpop.f32.mrb[0].mxu0
    %v526 = vadd.f32 0.0, %v525
    %v527 = vpop.f32.mrb[0].mxu0
    %528 = vdwg.mxu0
    %v529 = vadd.f32 %v449, %v526
    %v530 = vxor.u32 %v529, 2147483648
    %v531 = vmul.f32 %v530, 1.442695
    %v532 = vpow.pop %v531
    %v533 = vadd.f32 %v532, 1.0
    %v534 = vrcp.pop %v533
    %v535 = vmul.f32 1.0, %v534
    %v536 = vtanh.pop %v529
    %v537 = vsel %vm225, %v536, %v535
    %v538 = vmul.f32 %v537, %v436
    %540 = vrot.lane.b32.xlu0 %v537, 64
    %v541 = vpop.permute.xlu0 %540
    %v543 = vmul.f32 %v537, %v541
    %545 = vrot.lane.b32.xlu0 %v543, 32
    %v546 = vpop.permute.xlu0 %545
    %v548 = vadd.f32 %v538, %v546
    %v549 = vtanh.pop %v548
    %551 = vrot.lane.b32.xlu0 %v549, 64
    %v552 = vpop.permute.xlu0 %551
    %v554 = vmul.f32 %v537, %v552
    %v555 = vmax.f32 %v554, 0.0
    %557 = vrot.lane.b32.xlu0 %v555, 32
    %v558 = vpop.permute.xlu0 %557
    %560 = vst.msk [vmem:[#allocation3 + $0x10] sm:$0xff] %vm231, %v558
    %v561 = vld [vmem:[#allocation2 + $0x18] sm:$0xff]
    %v562 = vld [vmem:[%s2] sm:$0xff]
    %v563 = vld [vmem:[%s2 + $0x8] sm:$0xff]
    %v564 = vld [vmem:[%s2 + $0x10] sm:$0xff]
    %v565 = vld [vmem:[%s2 + $0x18] sm:$0xff]
    %567 = vrot.lane.b32.xlu0 %v554, 32
    %v568 = vpop.permute.xlu0 %567
    %v569 = vsel %vm231, %v568, 0
    %571 = vmatprep.subr.mxu0 0.0
    %572 = vmatpush1.msra.mxu0 %v562
    %573 = vmatprep.subr.mxu0 0.0
    %574 = vmatpush1.msra.mxu0 %v563
    %575 = vmatprep.subr.mxu0 0.0
    %576 = vmatpush1.msra.mxu0 %v564
    %577 = vmatprep.subr.mxu0 0.0
    %578 = vmatpush1.msra.mxu0 %v565
    %579 = vmatprep.subr.mxu0 0.0
    %580 = vmatpush1.msra.mxu0 0.0
    %581 = vmatprep.subr.mxu0 0.0
    %582 = vmatpush1.msra.mxu0 0.0
    %583 = vmatprep.subr.mxu0 0.0
    %584 = vmatpush1.msra.mxu0 0.0
    %585 = vmatprep.subr.mxu0 0.0
    %586 = vmatpush1.msra.mxu0 0.0
    %587 = vmatprep.subr.mxu0 0.0
    %588 = vmatpush1.msra.mxu0 0.0
    %589 = vmatprep.subr.mxu0 0.0
    %590 = vmatpush1.msra.mxu0 0.0
    %591 = vmatprep.subr.mxu0 0.0
    %592 = vmatpush1.msra.mxu0 0.0
    %593 = vmatprep.subr.mxu0 0.0
    %594 = vmatpush1.msra.mxu0 0.0
    %595 = vmatprep.subr.mxu0 0.0
    %596 = vmatpush1.msra.mxu0 0.0
    %597 = vmatprep.subr.mxu0 0.0
    %598 = vmatpush1.msra.mxu0 0.0
    %599 = vmatprep.subr.mxu0 0.0
    %600 = vmatpush1.msra.mxu0 0.0
    %601 = vmatprep.subr.mxu0 0.0
    %602 = vmatpush1.msra.mxu0 0.0
    %603 = vmatprep.subr.mxu0 0.0
    %604 = vmatpush1.msra.mxu0 0.0
    %605 = vmatprep.subr.mxu0 0.0
    %606 = vmatpush1.msra.mxu0 0.0
    %607 = vmatprep.subr.mxu0 0.0
    %608 = vmatpush1.msra.mxu0 0.0
    %609 = vmatprep.subr.mxu0 0.0
    %610 = vmatpush1.msra.mxu0 0.0
    %611 = vmatprep.subr.mxu0 0.0
    %612 = vmatpush1.msra.mxu0 0.0
    %613 = vmatprep.subr.mxu0 0.0
    %614 = vmatpush1.msra.mxu0 0.0
    %615 = vmatprep.subr.mxu0 0.0
    %616 = vmatpush1.msra.mxu0 0.0
    %617 = vmatprep.subr.mxu0 0.0
    %618 = vmatpush1.msra.mxu0 0.0
    %619 = vmatprep.subr.mxu0 0.0
    %620 = vmatpush1.msra.mxu0 0.0
    %621 = vmatprep.subr.mxu0 0.0
    %622 = vmatpush1.msra.mxu0 0.0
    %623 = vmatprep.subr.mxu0 0.0
    %624 = vmatpush1.msra.mxu0 0.0
    %625 = vmatprep.subr.mxu0 0.0
    %626 = vmatpush1.msra.mxu0 0.0
    %627 = vmatprep.subr.mxu0 0.0
    %628 = vmatpush1.msra.mxu0 0.0
    %629 = vmatprep.subr.mxu0 0.0
    %630 = vmatpush1.msra.mxu0 0.0
    %631 = vmatprep.subr.mxu0 0.0
    %632 = vmatpush1.msra.mxu0 0.0
    %633 = vmatprep.subr.mxu0 0.0
    %634 = vmatpush1.msra.mxu0 0.0
    %635 = vmatprep.mubr.f32.mxu0 0.0
    %636 = vmatmul.mubr.f32.gmra.mrb[0].mxu0 %v569
    %v637 = vpop.f32.mrb[0].mxu0
    %v638 = vadd.f32 0.0, %v637
    %v639 = vpop.f32.mrb[0].mxu0
    %640 = vdwg.mxu0
    %v641 = vadd.f32 %v561, %v638
    %v642 = vxor.u32 %v641, 2147483648
    %v643 = vmul.f32 %v642, 1.442695
    %v644 = vpow.pop %v643
    %v645 = vadd.f32 %v644, 1.0
    %v646 = vrcp.pop %v645
    %v647 = vmul.f32 1.0, %v646
    %v648 = vtanh.pop %v641
    %v649 = vsel %vm225, %v648, %v647
    %v650 = vmul.f32 %v649, %v548
    %652 = vrot.lane.b32.xlu0 %v649, 64
    %v653 = vpop.permute.xlu0 %652
    %v655 = vmul.f32 %v649, %v653
    %657 = vrot.lane.b32.xlu0 %v655, 32
    %v658 = vpop.permute.xlu0 %657
    %v660 = vadd.f32 %v650, %v658
    %v661 = vtanh.pop %v660
    %663 = vrot.lane.b32.xlu0 %v661, 64
    %v664 = vpop.permute.xlu0 %663
    %v666 = vmul.f32 %v649, %v664
    %v667 = vmax.f32 %v666, 0.0
    %669 = vrot.lane.b32.xlu0 %v667, 32
    %v670 = vpop.permute.xlu0 %669
    %672 = vst.msk [vmem:[#allocation3 + $0x18] sm:$0xff] %vm231, %v670
    %v673 = vld [vmem:[#allocation2 + $0x20] sm:$0xff]
    %v674 = vld [vmem:[%s2] sm:$0xff]
    %v675 = vld [vmem:[%s2 + $0x8] sm:$0xff]
    %v676 = vld [vmem:[%s2 + $0x10] sm:$0xff]
    %v677 = vld [vmem:[%s2 + $0x18] sm:$0xff]
    %679 = vrot.lane.b32.xlu0 %v666, 32
    %v680 = vpop.permute.xlu0 %679
    %v681 = vsel %vm231, %v680, 0
    %683 = vmatprep.subr.mxu0 0.0
    %684 = vmatpush1.msra.mxu0 %v674
    %685 = vmatprep.subr.mxu0 0.0
    %686 = vmatpush1.msra.mxu0 %v675
    %687 = vmatprep.subr.mxu0 0.0
    %688 = vmatpush1.msra.mxu0 %v676
    %689 = vmatprep.subr.mxu0 0.0
    %690 = vmatpush1.msra.mxu0 %v677
    %691 = vmatprep.subr.mxu0 0.0
    %692 = vmatpush1.msra.mxu0 0.0
    %693 = vmatprep.subr.mxu0 0.0
    %694 = vmatpush1.msra.mxu0 0.0
    %695 = vmatprep.subr.mxu0 0.0
    %696 = vmatpush1.msra.mxu0 0.0
    %697 = vmatprep.subr.mxu0 0.0
    %698 = vmatpush1.msra.mxu0 0.0
    %699 = vmatprep.subr.mxu0 0.0
    %700 = vmatpush1.msra.mxu0 0.0
    %701 = vmatprep.subr.mxu0 0.0
    %702 = vmatpush1.msra.mxu0 0.0
    %703 = vmatprep.subr.mxu0 0.0
    %704 = vmatpush1.msra.mxu0 0.0
    %705 = vmatprep.subr.mxu0 0.0
    %706 = vmatpush1.msra.mxu0 0.0
    %707 = vmatprep.subr.mxu0 0.0
    %708 = vmatpush1.msra.mxu0 0.0
    %709 = vmatprep.subr.mxu0 0.0
    %710 = vmatpush1.msra.mxu0 0.0
    %711 = vmatprep.subr.mxu0 0.0
    %712 = vmatpush1.msra.mxu0 0.0
    %713 = vmatprep.subr.mxu0 0.0
    %714 = vmatpush1.msra.mxu0 0.0
    %715 = vmatprep.subr.mxu0 0.0
    %716 = vmatpush1.msra.mxu0 0.0
    %717 = vmatprep.subr.mxu0 0.0
    %718 = vmatpush1.msra.mxu0 0.0
    %719 = vmatprep.subr.mxu0 0.0
    %720 = vmatpush1.msra.mxu0 0.0
    %721 = vmatprep.subr.mxu0 0.0
    %722 = vmatpush1.msra.mxu0 0.0
    %723 = vmatprep.subr.mxu0 0.0
    %724 = vmatpush1.msra.mxu0 0.0
    %725 = vmatprep.subr.mxu0 0.0
    %726 = vmatpush1.msra.mxu0 0.0
    %727 = vmatprep.subr.mxu0 0.0
    %728 = vmatpush1.msra.mxu0 0.0
    %729 = vmatprep.subr.mxu0 0.0
    %730 = vmatpush1.msra.mxu0 0.0
    %731 = vmatprep.subr.mxu0 0.0
    %732 = vmatpush1.msra.mxu0 0.0
    %733 = vmatprep.subr.mxu0 0.0
    %734 = vmatpush1.msra.mxu0 0.0
    %735 = vmatprep.subr.mxu0 0.0
    %736 = vmatpush1.msra.mxu0 0.0
    %737 = vmatprep.subr.mxu0 0.0
    %738 = vmatpush1.msra.mxu0 0.0
    %739 = vmatprep.subr.mxu0 0.0
    %740 = vmatpush1.msra.mxu0 0.0
    %741 = vmatprep.subr.mxu0 0.0
    %742 = vmatpush1.msra.mxu0 0.0
    %743 = vmatprep.subr.mxu0 0.0
    %744 = vmatpush1.msra.mxu0 0.0
    %745 = vmatprep.subr.mxu0 0.0
    %746 = vmatpush1.msra.mxu0 0.0
    %747 = vmatprep.mubr.f32.mxu0 0.0
    %748 = vmatmul.mubr.f32.gmra.mrb[0].mxu0 %v681
    %v749 = vpop.f32.mrb[0].mxu0
    %v750 = vadd.f32 0.0, %v749
    %v751 = vpop.f32.mrb[0].mxu0
    %752 = vdwg.mxu0
    %v753 = vadd.f32 %v673, %v750
    %v754 = vxor.u32 %v753, 2147483648
    %v755 = vmul.f32 %v754, 1.442695
    %v756 = vpow.pop %v755
    %v757 = vadd.f32 %v756, 1.0
    %v758 = vrcp.pop %v757
    %v759 = vmul.f32 1.0, %v758
    %v760 = vtanh.pop %v753
    %v761 = vsel %vm225, %v760, %v759
    %v762 = vmul.f32 %v761, %v660
    %764 = vrot.lane.b32.xlu0 %v761, 64
    %v765 = vpop.permute.xlu0 %764
    %v767 = vmul.f32 %v761, %v765
    %769 = vrot.lane.b32.xlu0 %v767, 32
    %v770 = vpop.permute.xlu0 %769
    %v772 = vadd.f32 %v762, %v770
    %v773 = vtanh.pop %v772
    %775 = vrot.lane.b32.xlu0 %v773, 64
    %v776 = vpop.permute.xlu0 %775
    %v778 = vmul.f32 %v761, %v776
    %v779 = vmax.f32 %v778, 0.0
    %781 = vrot.lane.b32.xlu0 %v779, 32
    %v782 = vpop.permute.xlu0 %781
    %784 = vst.msk [vmem:[#allocation3 + $0x20] sm:$0xff] %vm231, %v782
    %v785 = vld [vmem:[#allocation2 + $0x28] sm:$0xff]
    %v786 = vld [vmem:[%s2] sm:$0xff]
    %v787 = vld [vmem:[%s2 + $0x8] sm:$0xff]
    %v788 = vld [vmem:[%s2 + $0x10] sm:$0xff]
    %v789 = vld [vmem:[%s2 + $0x18] sm:$0xff]
    %791 = vrot.lane.b32.xlu0 %v778, 32
    %v792 = vpop.permute.xlu0 %791
    %v793 = vsel %vm231, %v792, 0
    %795 = vmatprep.subr.mxu0 0.0
    %796 = vmatpush1.msra.mxu0 %v786
    %797 = vmatprep.subr.mxu0 0.0
    %798 = vmatpush1.msra.mxu0 %v787
    %799 = vmatprep.subr.mxu0 0.0
    %800 = vmatpush1.msra.mxu0 %v788
    %801 = vmatprep.subr.mxu0 0.0
    %802 = vmatpush1.msra.mxu0 %v789
    %803 = vmatprep.subr.mxu0 0.0
    %804 = vmatpush1.msra.mxu0 0.0
    %805 = vmatprep.subr.mxu0 0.0
    %806 = vmatpush1.msra.mxu0 0.0
    %807 = vmatprep.subr.mxu0 0.0
    %808 = vmatpush1.msra.mxu0 0.0
    %809 = vmatprep.subr.mxu0 0.0
    %810 = vmatpush1.msra.mxu0 0.0
    %811 = vmatprep.subr.mxu0 0.0
    %812 = vmatpush1.msra.mxu0 0.0
    %813 = vmatprep.subr.mxu0 0.0
    %814 = vmatpush1.msra.mxu0 0.0
    %815 = vmatprep.subr.mxu0 0.0
    %816 = vmatpush1.msra.mxu0 0.0
    %817 = vmatprep.subr.mxu0 0.0
    %818 = vmatpush1.msra.mxu0 0.0
    %819 = vmatprep.subr.mxu0 0.0
    %820 = vmatpush1.msra.mxu0 0.0
    %821 = vmatprep.subr.mxu0 0.0
    %822 = vmatpush1.msra.mxu0 0.0
    %823 = vmatprep.subr.mxu0 0.0
    %824 = vmatpush1.msra.mxu0 0.0
    %825 = vmatprep.subr.mxu0 0.0
    %826 = vmatpush1.msra.mxu0 0.0
    %827 = vmatprep.subr.mxu0 0.0
    %828 = vmatpush1.msra.mxu0 0.0
    %829 = vmatprep.subr.mxu0 0.0
    %830 = vmatpush1.msra.mxu0 0.0
    %831 = vmatprep.subr.mxu0 0.0
    %832 = vmatpush1.msra.mxu0 0.0
    %833 = vmatprep.subr.mxu0 0.0
    %834 = vmatpush1.msra.mxu0 0.0
    %835 = vmatprep.subr.mxu0 0.0
    %836 = vmatpush1.msra.mxu0 0.0
    %837 = vmatprep.subr.mxu0 0.0
    %838 = vmatpush1.msra.mxu0 0.0
    %839 = vmatprep.subr.mxu0 0.0
    %840 = vmatpush1.msra.mxu0 0.0
    %841 = vmatprep.subr.mxu0 0.0
    %842 = vmatpush1.msra.mxu0 0.0
    %843 = vmatprep.subr.mxu0 0.0
    %844 = vmatpush1.msra.mxu0 0.0
    %845 = vmatprep.subr.mxu0 0.0
    %846 = vmatpush1.msra.mxu0 0.0
    %847 = vmatprep.subr.mxu0 0.0
    %848 = vmatpush1.msra.mxu0 0.0
    %849 = vmatprep.subr.mxu0 0.0
    %850 = vmatpush1.msra.mxu0 0.0
    %851 = vmatprep.subr.mxu0 0.0
    %852 = vmatpush1.msra.mxu0 0.0
    %853 = vmatprep.subr.mxu0 0.0
    %854 = vmatpush1.msra.mxu0 0.0
    %855 = vmatprep.subr.mxu0 0.0
    %856 = vmatpush1.msra.mxu0 0.0
    %857 = vmatprep.subr.mxu0 0.0
    %858 = vmatpush1.msra.mxu0 0.0
    %859 = vmatprep.mubr.f32.mxu0 0.0
    %860 = vmatmul.mubr.f32.gmra.mrb[0].mxu0 %v793
    %v861 = vpop.f32.mrb[0].mxu0
    %v862 = vadd.f32 0.0, %v861
    %v863 = vpop.f32.mrb[0].mxu0
    %864 = vdwg.mxu0
    %v865 = vadd.f32 %v785, %v862
    %v866 = vxor.u32 %v865, 2147483648
    %v867 = vmul.f32 %v866, 1.442695
    %v868 = vpow.pop %v867
    %v869 = vadd.f32 %v868, 1.0
    %v870 = vrcp.pop %v869
    %v871 = vmul.f32 1.0, %v870
    %v872 = vtanh.pop %v865
    %v873 = vsel %vm225, %v872, %v871
    %v874 = vmul.f32 %v873, %v772
    %876 = vrot.lane.b32.xlu0 %v873, 64
    %v877 = vpop.permute.xlu0 %876
    %v879 = vmul.f32 %v873, %v877
    %881 = vrot.lane.b32.xlu0 %v879, 32
    %v882 = vpop.permute.xlu0 %881
    %v884 = vadd.f32 %v874, %v882
    %v885 = vtanh.pop %v884
    %887 = vrot.lane.b32.xlu0 %v885, 64
    %v888 = vpop.permute.xlu0 %887
    %v890 = vmul.f32 %v873, %v888
    %v891 = vmax.f32 %v890, 0.0
    %893 = vrot.lane.b32.xlu0 %v891, 32
    %v894 = vpop.permute.xlu0 %893
    %896 = vst.msk [vmem:[#allocation3 + $0x28] sm:$0xff] %vm231, %v894
    %v897 = vld [vmem:[#allocation2 + $0x30] sm:$0xff]
    %v898 = vld [vmem:[%s2] sm:$0xff]
    %v899 = vld [vmem:[%s2 + $0x8] sm:$0xff]
    %v900 = vld [vmem:[%s2 + $0x10] sm:$0xff]
    %v901 = vld [vmem:[%s2 + $0x18] sm:$0xff]
    %903 = vrot.lane.b32.xlu0 %v890, 32
    %v904 = vpop.permute.xlu0 %903
    %v905 = vsel %vm231, %v904, 0
    %907 = vmatprep.subr.mxu0 0.0
    %908 = vmatpush1.msra.mxu0 %v898
    %909 = vmatprep.subr.mxu0 0.0
    %910 = vmatpush1.msra.mxu0 %v899
    %911 = vmatprep.subr.mxu0 0.0
    %912 = vmatpush1.msra.mxu0 %v900
    %913 = vmatprep.subr.mxu0 0.0
    %914 = vmatpush1.msra.mxu0 %v901
    %915 = vmatprep.subr.mxu0 0.0
    %916 = vmatpush1.msra.mxu0 0.0
    %917 = vmatprep.subr.mxu0 0.0
    %918 = vmatpush1.msra.mxu0 0.0
    %919 = vmatprep.subr.mxu0 0.0
    %920 = vmatpush1.msra.mxu0 0.0
    %921 = vmatprep.subr.mxu0 0.0
    %922 = vmatpush1.msra.mxu0 0.0
    %923 = vmatprep.subr.mxu0 0.0
    %924 = vmatpush1.msra.mxu0 0.0
    %925 = vmatprep.subr.mxu0 0.0
    %926 = vmatpush1.msra.mxu0 0.0
    %927 = vmatprep.subr.mxu0 0.0
    %928 = vmatpush1.msra.mxu0 0.0
    %929 = vmatprep.subr.mxu0 0.0
    %930 = vmatpush1.msra.mxu0 0.0
    %931 = vmatprep.subr.mxu0 0.0
    %932 = vmatpush1.msra.mxu0 0.0
    %933 = vmatprep.subr.mxu0 0.0
    %934 = vmatpush1.msra.mxu0 0.0
    %935 = vmatprep.subr.mxu0 0.0
    %936 = vmatpush1.msra.mxu0 0.0
    %937 = vmatprep.subr.mxu0 0.0
    %938 = vmatpush1.msra.mxu0 0.0
    %939 = vmatprep.subr.mxu0 0.0
    %940 = vmatpush1.msra.mxu0 0.0
    %941 = vmatprep.subr.mxu0 0.0
    %942 = vmatpush1.msra.mxu0 0.0
    %943 = vmatprep.subr.mxu0 0.0
    %944 = vmatpush1.msra.mxu0 0.0
    %945 = vmatprep.subr.mxu0 0.0
    %946 = vmatpush1.msra.mxu0 0.0
    %947 = vmatprep.subr.mxu0 0.0
    %948 = vmatpush1.msra.mxu0 0.0
    %949 = vmatprep.subr.mxu0 0.0
    %950 = vmatpush1.msra.mxu0 0.0
    %951 = vmatprep.subr.mxu0 0.0
    %952 = vmatpush1.msra.mxu0 0.0
    %953 = vmatprep.subr.mxu0 0.0
    %954 = vmatpush1.msra.mxu0 0.0
    %955 = vmatprep.subr.mxu0 0.0
    %956 = vmatpush1.msra.mxu0 0.0
    %957 = vmatprep.subr.mxu0 0.0
    %958 = vmatpush1.msra.mxu0 0.0
    %959 = vmatprep.subr.mxu0 0.0
    %960 = vmatpush1.msra.mxu0 0.0
    %961 = vmatprep.subr.mxu0 0.0
    %962 = vmatpush1.msra.mxu0 0.0
    %963 = vmatprep.subr.mxu0 0.0
    %964 = vmatpush1.msra.mxu0 0.0
    %965 = vmatprep.subr.mxu0 0.0
    %966 = vmatpush1.msra.mxu0 0.0
    %967 = vmatprep.subr.mxu0 0.0
    %968 = vmatpush1.msra.mxu0 0.0
    %969 = vmatprep.subr.mxu0 0.0
    %970 = vmatpush1.msra.mxu0 0.0
    %971 = vmatprep.mubr.f32.mxu0 0.0
    %972 = vmatmul.mubr.f32.gmra.mrb[0].mxu0 %v905
    %v973 = vpop.f32.mrb[0].mxu0
    %v974 = vadd.f32 0.0, %v973
    %v975 = vpop.f32.mrb[0].mxu0
    %976 = vdwg.mxu0
    %v977 = vadd.f32 %v897, %v974
    %v978 = vxor.u32 %v977, 2147483648
    %v979 = vmul.f32 %v978, 1.442695
    %v980 = vpow.pop %v979
    %v981 = vadd.f32 %v980, 1.0
    %v982 = vrcp.pop %v981
    %v983 = vmul.f32 1.0, %v982
    %v984 = vtanh.pop %v977
    %v985 = vsel %vm225, %v984, %v983
    %v986 = vmul.f32 %v985, %v884
    %988 = vrot.lane.b32.xlu0 %v985, 64
    %v989 = vpop.permute.xlu0 %988
    %v991 = vmul.f32 %v985, %v989
    %993 = vrot.lane.b32.xlu0 %v991, 32
    %v994 = vpop.permute.xlu0 %993
    %v996 = vadd.f32 %v986, %v994
    %v997 = vtanh.pop %v996
    %999 = vrot.lane.b32.xlu0 %v997, 64
    %v1000 = vpop.permute.xlu0 %999
    %v1002 = vmul.f32 %v985, %v1000
    %v1003 = vmax.f32 %v1002, 0.0
    %1005 = vrot.lane.b32.xlu0 %v1003, 32
    %v1006 = vpop.permute.xlu0 %1005
    %1008 = vst.msk [vmem:[#allocation3 + $0x30] sm:$0xff] %vm231, %v1006
    %v1009 = vld [vmem:[#allocation2 + $0x38] sm:$0xff]
    %v1010 = vld [vmem:[%s2] sm:$0xff]
    %v1011 = vld [vmem:[%s2 + $0x8] sm:$0xff]
    %v1012 = vld [vmem:[%s2 + $0x10] sm:$0xff]
    %v1013 = vld [vmem:[%s2 + $0x18] sm:$0xff]
    %1015 = vrot.lane.b32.xlu0 %v1002, 32
    %v1016 = vpop.permute.xlu0 %1015
    %v1017 = vsel %vm231, %v1016, 0
    %1019 = vmatprep.subr.mxu0 0.0
    %1020 = vmatpush1.msra.mxu0 %v1010
    %1021 = vmatprep.subr.mxu0 0.0
    %1022 = vmatpush1.msra.mxu0 %v1011
    %1023 = vmatprep.subr.mxu0 0.0
    %1024 = vmatpush1.msra.mxu0 %v1012
    %1025 = vmatprep.subr.mxu0 0.0
    %1026 = vmatpush1.msra.mxu0 %v1013
    %1027 = vmatprep.subr.mxu0 0.0
    %1028 = vmatpush1.msra.mxu0 0.0
    %1029 = vmatprep.subr.mxu0 0.0
    %1030 = vmatpush1.msra.mxu0 0.0
    %1031 = vmatprep.subr.mxu0 0.0
    %1032 = vmatpush1.msra.mxu0 0.0
    %1033 = vmatprep.subr.mxu0 0.0
    %1034 = vmatpush1.msra.mxu0 0.0
    %1035 = vmatprep.subr.mxu0 0.0
    %1036 = vmatpush1.msra.mxu0 0.0
    %1037 = vmatprep.subr.mxu0 0.0
    %1038 = vmatpush1.msra.mxu0 0.0
    %1039 = vmatprep.subr.mxu0 0.0
    %1040 = vmatpush1.msra.mxu0 0.0
    %1041 = vmatprep.subr.mxu0 0.0
    %1042 = vmatpush1.msra.mxu0 0.0
    %1043 = vmatprep.subr.mxu0 0.0
    %1044 = vmatpush1.msra.mxu0 0.0
    %1045 = vmatprep.subr.mxu0 0.0
    %1046 = vmatpush1.msra.mxu0 0.0
    %1047 = vmatprep.subr.mxu0 0.0
    %1048 = vmatpush1.msra.mxu0 0.0
    %1049 = vmatprep.subr.mxu0 0.0
    %1050 = vmatpush1.msra.mxu0 0.0
    %1051 = vmatprep.subr.mxu0 0.0
    %1052 = vmatpush1.msra.mxu0 0.0
    %1053 = vmatprep.subr.mxu0 0.0
    %1054 = vmatpush1.msra.mxu0 0.0
    %1055 = vmatprep.subr.mxu0 0.0
    %1056 = vmatpush1.msra.mxu0 0.0
    %1057 = vmatprep.subr.mxu0 0.0
    %1058 = vmatpush1.msra.mxu0 0.0
    %1059 = vmatprep.subr.mxu0 0.0
    %1060 = vmatpush1.msra.mxu0 0.0
    %1061 = vmatprep.subr.mxu0 0.0
    %1062 = vmatpush1.msra.mxu0 0.0
    %1063 = vmatprep.subr.mxu0 0.0
    %1064 = vmatpush1.msra.mxu0 0.0
    %1065 = vmatprep.subr.mxu0 0.0
    %1066 = vmatpush1.msra.mxu0 0.0
    %1067 = vmatprep.subr.mxu0 0.0
    %1068 = vmatpush1.msra.mxu0 0.0
    %1069 = vmatprep.subr.mxu0 0.0
    %1070 = vmatpush1.msra.mxu0 0.0
    %1071 = vmatprep.subr.mxu0 0.0
    %1072 = vmatpush1.msra.mxu0 0.0
    %1073 = vmatprep.subr.mxu0 0.0
    %1074 = vmatpush1.msra.mxu0 0.0
    %1075 = vmatprep.subr.mxu0 0.0
    %1076 = vmatpush1.msra.mxu0 0.0
    %1077 = vmatprep.subr.mxu0 0.0
    %1078 = vmatpush1.msra.mxu0 0.0
    %1079 = vmatprep.subr.mxu0 0.0
    %1080 = vmatpush1.msra.mxu0 0.0
    %1081 = vmatprep.subr.mxu0 0.0
    %1082 = vmatpush1.msra.mxu0 0.0
    %1083 = vmatprep.mubr.f32.mxu0 0.0
    %1084 = vmatmul.mubr.f32.gmra.mrb[0].mxu0 %v1017
    %v1085 = vpop.f32.mrb[0].mxu0
    %v1086 = vadd.f32 0.0, %v1085
    %v1087 = vpop.f32.mrb[0].mxu0
    %1088 = vdwg.mxu0
    %v1089 = vadd.f32 %v1009, %v1086
    %v1090 = vxor.u32 %v1089, 2147483648
    %v1091 = vmul.f32 %v1090, 1.442695
    %v1092 = vpow.pop %v1091
    %v1093 = vadd.f32 %v1092, 1.0
    %v1094 = vrcp.pop %v1093
    %v1095 = vmul.f32 1.0, %v1094
    %v1096 = vtanh.pop %v1089
    %v1097 = vsel %vm225, %v1096, %v1095
    %v1098 = vmul.f32 %v1097, %v996
    %1100 = vrot.lane.b32.xlu0 %v1097, 64
    %v1101 = vpop.permute.xlu0 %1100
    %v1103 = vmul.f32 %v1097, %v1101
    %1105 = vrot.lane.b32.xlu0 %v1103, 32
    %v1106 = vpop.permute.xlu0 %1105
    %v1108 = vadd.f32 %v1098, %v1106
    %v1109 = vtanh.pop %v1108
    %1111 = vrot.lane.b32.xlu0 %v1109, 64
    %v1112 = vpop.permute.xlu0 %1111
    %v1114 = vmul.f32 %v1097, %v1112
    %v1115 = vmax.f32 %v1114, 0.0
    %1117 = vrot.lane.b32.xlu0 %v1115, 32
    %v1118 = vpop.permute.xlu0 %1117
    %1120 = vst.msk [vmem:[#allocation3 + $0x38] sm:$0xff] %vm231, %v1118
    %v1121 = vld [vmem:[#allocation3] sm:$0xff]
    %v1122 = vld [vmem:[#allocation3 + $0x8] sm:$0xff]
    %v1123 = vld [vmem:[#allocation3 + $0x10] sm:$0xff]
    %v1124 = vld [vmem:[#allocation3 + $0x18] sm:$0xff]
    %v1125 = vld [vmem:[#allocation3 + $0x20] sm:$0xff]
    %v1126 = vld [vmem:[#allocation3 + $0x28] sm:$0xff]
    %v1127 = vld [vmem:[#allocation3 + $0x30] sm:$0xff]
    %v1128 = vld [vmem:[#allocation3 + $0x38] sm:$0xff]
    %v1129 = vld [vmem:[#allocation4] sm:$0xff]
    %v1130 = vld [vmem:[#allocation4 + $0x8] sm:$0xff]
    %v1131 = vld [vmem:[#allocation4 + $0x10] sm:$0xff]
    %v1132 = vld [vmem:[#allocation4 + $0x18] sm:$0xff]
    %v1133 = vld [vmem:[#allocation4 + $0x20] sm:$0xff]
    %v1134 = vld [vmem:[#allocation4 + $0x28] sm:$0xff]
    %v1135 = vld [vmem:[#allocation4 + $0x30] sm:$0xff]
    %v1136 = vld [vmem:[#allocation4 + $0x38] sm:$0xff]
    %v1137 = vld [vmem:[#allocation4 + $0x40] sm:$0xff]
    %v1138 = vld [vmem:[#allocation4 + $0x48] sm:$0xff]
    %v1139 = vld [vmem:[#allocation4 + $0x50] sm:$0xff]
    %v1140 = vld [vmem:[#allocation4 + $0x58] sm:$0xff]
    %v1141 = vld [vmem:[#allocation4 + $0x60] sm:$0xff]
    %v1142 = vld [vmem:[#allocation4 + $0x68] sm:$0xff]
    %v1143 = vld [vmem:[#allocation4 + $0x70] sm:$0xff]
    %v1144 = vld [vmem:[#allocation4 + $0x78] sm:$0xff]
    %v1145 = vld [vmem:[#allocation4 + $0x80] sm:$0xff]
    %v1146 = vld [vmem:[#allocation4 + $0x88] sm:$0xff]
    %v1147 = vld [vmem:[#allocation4 + $0x90] sm:$0xff]
    %v1148 = vld [vmem:[#allocation4 + $0x98] sm:$0xff]
    %v1149 = vld [vmem:[#allocation4 + $0xa0] sm:$0xff]
    %v1150 = vld [vmem:[#allocation4 + $0xa8] sm:$0xff]
    %v1151 = vld [vmem:[#allocation4 + $0xb0] sm:$0xff]
    %v1152 = vld [vmem:[#allocation4 + $0xb8] sm:$0xff]
    %v1153 = vld [vmem:[#allocation4 + $0xc0] sm:$0xff]
    %v1154 = vld [vmem:[#allocation4 + $0xc8] sm:$0xff]
    %v1155 = vld [vmem:[#allocation4 + $0xd0] sm:$0xff]
    %v1156 = vld [vmem:[#allocation4 + $0xd8] sm:$0xff]
    %v1157 = vld [vmem:[#allocation4 + $0xe0] sm:$0xff]
    %v1158 = vld [vmem:[#allocation4 + $0xe8] sm:$0xff]
    %v1159 = vld [vmem:[#allocation4 + $0xf0] sm:$0xff]
    %v1160 = vld [vmem:[#allocation4 + $0xf8] sm:$0xff]
    %v1161 = vld [vmem:[#allocation4 + $0x100] sm:$0xff]
    %v1162 = vld [vmem:[#allocation4 + $0x108] sm:$0xff]
    %v1163 = vld [vmem:[#allocation4 + $0x110] sm:$0xff]
    %v1164 = vld [vmem:[#allocation4 + $0x118] sm:$0xff]
    %v1165 = vld [vmem:[#allocation4 + $0x120] sm:$0xff]
    %v1166 = vld [vmem:[#allocation4 + $0x128] sm:$0xff]
    %v1167 = vld [vmem:[#allocation4 + $0x130] sm:$0xff]
    %v1168 = vld [vmem:[#allocation4 + $0x138] sm:$0xff]
    %v1169 = vld [vmem:[#allocation4 + $0x140] sm:$0xff]
    %v1170 = vld [vmem:[#allocation4 + $0x148] sm:$0xff]
    %v1171 = vld [vmem:[#allocation4 + $0x150] sm:$0xff]
    %v1172 = vld [vmem:[#allocation4 + $0x158] sm:$0xff]
    %v1173 = vld [vmem:[#allocation4 + $0x160] sm:$0xff]
    %v1174 = vld [vmem:[#allocation4 + $0x168] sm:$0xff]
    %v1175 = vld [vmem:[#allocation4 + $0x170] sm:$0xff]
    %v1176 = vld [vmem:[#allocation4 + $0x178] sm:$0xff]
    %v1177 = vld [vmem:[#allocation4 + $0x180] sm:$0xff]
    %v1178 = vld [vmem:[#allocation4 + $0x188] sm:$0xff]
    %v1179 = vld [vmem:[#allocation4 + $0x190] sm:$0xff]
    %v1180 = vld [vmem:[#allocation4 + $0x198] sm:$0xff]
    %v1181 = vld [vmem:[#allocation4 + $0x1a0] sm:$0xff]
    %v1182 = vld [vmem:[#allocation4 + $0x1a8] sm:$0xff]
    %v1183 = vld [vmem:[#allocation4 + $0x1b0] sm:$0xff]
    %v1184 = vld [vmem:[#allocation4 + $0x1b8] sm:$0xff]
    %v1185 = vld [vmem:[#allocation4 + $0x1c0] sm:$0xff]
    %v1186 = vld [vmem:[#allocation4 + $0x1c8] sm:$0xff]
    %v1187 = vld [vmem:[#allocation4 + $0x1d0] sm:$0xff]
    %v1188 = vld [vmem:[#allocation4 + $0x1d8] sm:$0xff]
    %v1189 = vld [vmem:[#allocation4 + $0x1e0] sm:$0xff]
    %v1190 = vld [vmem:[#allocation4 + $0x1e8] sm:$0xff]
    %v1191 = vld [vmem:[#allocation4 + $0x1f0] sm:$0xff]
    %v1192 = vld [vmem:[#allocation4 + $0x1f8] sm:$0xff]
    %v1193 = vld [vmem:[#allocation4 + $0x200] sm:$0xff]
    %v1194 = vld [vmem:[#allocation4 + $0x208] sm:$0xff]
    %v1195 = vld [vmem:[#allocation4 + $0x210] sm:$0xff]
    %v1196 = vld [vmem:[#allocation4 + $0x218] sm:$0xff]
    %v1197 = vld [vmem:[#allocation4 + $0x220] sm:$0xff]
    %v1198 = vld [vmem:[#allocation4 + $0x228] sm:$0xff]
    %v1199 = vld [vmem:[#allocation4 + $0x230] sm:$0xff]
    %v1200 = vld [vmem:[#allocation4 + $0x238] sm:$0xff]
    %v1201 = vld [vmem:[#allocation4 + $0x240] sm:$0xff]
    %v1202 = vld [vmem:[#allocation4 + $0x248] sm:$0xff]
    %v1203 = vld [vmem:[#allocation4 + $0x250] sm:$0xff]
    %v1204 = vld [vmem:[#allocation4 + $0x258] sm:$0xff]
    %v1205 = vld [vmem:[#allocation4 + $0x260] sm:$0xff]
    %v1206 = vld [vmem:[#allocation4 + $0x268] sm:$0xff]
    %v1207 = vld [vmem:[#allocation4 + $0x270] sm:$0xff]
    %v1208 = vld [vmem:[#allocation4 + $0x278] sm:$0xff]
    %v1209 = vld [vmem:[#allocation4 + $0x280] sm:$0xff]
    %v1210 = vld [vmem:[#allocation4 + $0x288] sm:$0xff]
    %v1211 = vld [vmem:[#allocation4 + $0x290] sm:$0xff]
    %v1212 = vld [vmem:[#allocation4 + $0x298] sm:$0xff]
    %v1213 = vld [vmem:[#allocation4 + $0x2a0] sm:$0xff]
    %v1214 = vld [vmem:[#allocation4 + $0x2a8] sm:$0xff]
    %v1215 = vld [vmem:[#allocation4 + $0x2b0] sm:$0xff]
    %v1216 = vld [vmem:[#allocation4 + $0x2b8] sm:$0xff]
    %v1217 = vld [vmem:[#allocation4 + $0x2c0] sm:$0xff]
    %v1218 = vld [vmem:[#allocation4 + $0x2c8] sm:$0xff]
    %v1219 = vld [vmem:[#allocation4 + $0x2d0] sm:$0xff]
    %v1220 = vld [vmem:[#allocation4 + $0x2d8] sm:$0xff]
    %v1221 = vld [vmem:[#allocation4 + $0x2e0] sm:$0xff]
    %v1222 = vld [vmem:[#allocation4 + $0x2e8] sm:$0xff]
    %v1223 = vld [vmem:[#allocation4 + $0x2f0] sm:$0xff]
    %v1224 = vld [vmem:[#allocation4 + $0x2f8] sm:$0xff]
    %v1225 = vld [vmem:[#allocation4 + $0x300] sm:$0xff]
    %v1226 = vld [vmem:[#allocation4 + $0x308] sm:$0xff]
    %v1227 = vld [vmem:[#allocation4 + $0x310] sm:$0xff]
    %v1228 = vld [vmem:[#allocation4 + $0x318] sm:$0xff]
    %v1229 = vld [vmem:[#allocation4 + $0x320] sm:$0xff]
    %v1230 = vld [vmem:[#allocation4 + $0x328] sm:$0xff]
    %v1231 = vld [vmem:[#allocation4 + $0x330] sm:$0xff]
    %v1232 = vld [vmem:[#allocation4 + $0x338] sm:$0xff]
    %v1233 = vld [vmem:[#allocation4 + $0x340] sm:$0xff]
    %v1234 = vld [vmem:[#allocation4 + $0x348] sm:$0xff]
    %v1235 = vld [vmem:[#allocation4 + $0x350] sm:$0xff]
    %v1236 = vld [vmem:[#allocation4 + $0x358] sm:$0xff]
    %v1237 = vld [vmem:[#allocation4 + $0x360] sm:$0xff]
    %v1238 = vld [vmem:[#allocation4 + $0x368] sm:$0xff]
    %v1239 = vld [vmem:[#allocation4 + $0x370] sm:$0xff]
    %v1240 = vld [vmem:[#allocation4 + $0x378] sm:$0xff]
    %v1241 = vld [vmem:[#allocation4 + $0x380] sm:$0xff]
    %v1242 = vld [vmem:[#allocation4 + $0x388] sm:$0xff]
    %v1243 = vld [vmem:[#allocation4 + $0x390] sm:$0xff]
    %v1244 = vld [vmem:[#allocation4 + $0x398] sm:$0xff]
    %v1245 = vld [vmem:[#allocation4 + $0x3a0] sm:$0xff]
    %v1246 = vld [vmem:[#allocation4 + $0x3a8] sm:$0xff]
    %v1247 = vld [vmem:[#allocation4 + $0x3b0] sm:$0xff]
    %v1248 = vld [vmem:[#allocation4 + $0x3b8] sm:$0xff]
    %v1249 = vld [vmem:[#allocation4 + $0x3c0] sm:$0xff]
    %v1250 = vld [vmem:[#allocation4 + $0x3c8] sm:$0xff]
    %v1251 = vld [vmem:[#allocation4 + $0x3d0] sm:$0xff]
    %v1252 = vld [vmem:[#allocation4 + $0x3d8] sm:$0xff]
    %v1253 = vld [vmem:[#allocation4 + $0x3e0] sm:$0xff]
    %v1254 = vld [vmem:[#allocation4 + $0x3e8] sm:$0xff]
    %v1255 = vld [vmem:[#allocation4 + $0x3f0] sm:$0xff]
    %v1256 = vld [vmem:[#allocation4 + $0x3f8] sm:$0xff]
    %v1257 = vld [vmem:[%s5] sm:$0x1]
    %v1259 = vlaneseq
    %v1260 = vshrl.u32 %v1259, 7
    %v1261 = vsub.s32 0, %v1260
    %v1262 = vrot.slane %v1257, %v1261
    %1264 = vmatprep.subr.mxu0 0.0
    %1265 = vmatpush1.msra.mxu0 %v1129
    %1266 = vmatprep.subr.mxu0 0.0
    %1267 = vmatpush1.msra.mxu0 %v1130
    %1268 = vmatprep.subr.mxu0 0.0
    %1269 = vmatpush1.msra.mxu0 %v1131
    %1270 = vmatprep.subr.mxu0 0.0
    %1271 = vmatpush1.msra.mxu0 %v1132
    %1272 = vmatprep.subr.mxu0 0.0
    %1273 = vmatpush1.msra.mxu0 %v1133
    %1274 = vmatprep.subr.mxu0 0.0
    %1275 = vmatpush1.msra.mxu0 %v1134
    %1276 = vmatprep.subr.mxu0 0.0
    %1277 = vmatpush1.msra.mxu0 %v1135
    %1278 = vmatprep.subr.mxu0 0.0
    %1279 = vmatpush1.msra.mxu0 %v1136
    %1280 = vmatprep.subr.mxu0 0.0
    %1281 = vmatpush1.msra.mxu0 %v1137
    %1282 = vmatprep.subr.mxu0 0.0
    %1283 = vmatpush1.msra.mxu0 %v1138
    %1284 = vmatprep.subr.mxu0 0.0
    %1285 = vmatpush1.msra.mxu0 %v1139
    %1286 = vmatprep.subr.mxu0 0.0
    %1287 = vmatpush1.msra.mxu0 %v1140
    %1288 = vmatprep.subr.mxu0 0.0
    %1289 = vmatpush1.msra.mxu0 %v1141
    %1290 = vmatprep.subr.mxu0 0.0
    %1291 = vmatpush1.msra.mxu0 %v1142
    %1292 = vmatprep.subr.mxu0 0.0
    %1293 = vmatpush1.msra.mxu0 %v1143
    %1294 = vmatprep.subr.mxu0 0.0
    %1295 = vmatpush1.msra.mxu0 %v1144
    %1296 = vmatprep.subr.mxu0 0.0
    %1297 = vmatpush1.msra.mxu0 %v1145
    %1298 = vmatprep.subr.mxu0 0.0
    %1299 = vmatpush1.msra.mxu0 %v1146
    %1300 = vmatprep.subr.mxu0 0.0
    %1301 = vmatpush1.msra.mxu0 %v1147
    %1302 = vmatprep.subr.mxu0 0.0
    %1303 = vmatpush1.msra.mxu0 %v1148
    %1304 = vmatprep.subr.mxu0 0.0
    %1305 = vmatpush1.msra.mxu0 %v1149
    %1306 = vmatprep.subr.mxu0 0.0
    %1307 = vmatpush1.msra.mxu0 %v1150
    %1308 = vmatprep.subr.mxu0 0.0
    %1309 = vmatpush1.msra.mxu0 %v1151
    %1310 = vmatprep.subr.mxu0 0.0
    %1311 = vmatpush1.msra.mxu0 %v1152
    %1312 = vmatprep.subr.mxu0 0.0
    %1313 = vmatpush1.msra.mxu0 %v1153
    %1314 = vmatprep.subr.mxu0 0.0
    %1315 = vmatpush1.msra.mxu0 %v1154
    %1316 = vmatprep.subr.mxu0 0.0
    %1317 = vmatpush1.msra.mxu0 %v1155
    %1318 = vmatprep.subr.mxu0 0.0
    %1319 = vmatpush1.msra.mxu0 %v1156
    %1320 = vmatprep.subr.mxu0 0.0
    %1321 = vmatpush1.msra.mxu0 %v1157
    %1322 = vmatprep.subr.mxu0 0.0
    %1323 = vmatpush1.msra.mxu0 %v1158
    %1324 = vmatprep.subr.mxu0 0.0
    %1325 = vmatpush1.msra.mxu0 %v1159
    %1326 = vmatprep.subr.mxu0 0.0
    %1327 = vmatpush1.msra.mxu0 %v1160
    %1328 = vmatprep.mubr.f32.mxu0 %v1122
    %1329 = vmatmul.mubr.f32.gmra.mrb[0].mxu0 %v1121
    %v1330 = vpop.f32.mrb[0].mxu0
    %v1331 = vadd.f32 %v1262, %v1330
    %v1332 = vpop.f32.mrb[0].mxu0
    %1333 = vdwg.mxu0
    %1334 = vmatprep.subr.mxu0 0.0
    %1335 = vmatpush1.msra.mxu0 %v1161
    %1336 = vmatprep.subr.mxu0 0.0
    %1337 = vmatpush1.msra.mxu0 %v1162
    %1338 = vmatprep.subr.mxu0 0.0
    %1339 = vmatpush1.msra.mxu0 %v1163
    %1340 = vmatprep.subr.mxu0 0.0
    %1341 = vmatpush1.msra.mxu0 %v1164
    %1342 = vmatprep.subr.mxu0 0.0
    %1343 = vmatpush1.msra.mxu0 %v1165
    %1344 = vmatprep.subr.mxu0 0.0
    %1345 = vmatpush1.msra.mxu0 %v1166
    %1346 = vmatprep.subr.mxu0 0.0
    %1347 = vmatpush1.msra.mxu0 %v1167
    %1348 = vmatprep.subr.mxu0 0.0
    %1349 = vmatpush1.msra.mxu0 %v1168
    %1350 = vmatprep.subr.mxu0 0.0
    %1351 = vmatpush1.msra.mxu0 %v1169
    %1352 = vmatprep.subr.mxu0 0.0
    %1353 = vmatpush1.msra.mxu0 %v1170
    %1354 = vmatprep.subr.mxu0 0.0
    %1355 = vmatpush1.msra.mxu0 %v1171
    %1356 = vmatprep.subr.mxu0 0.0
    %1357 = vmatpush1.msra.mxu0 %v1172
    %1358 = vmatprep.subr.mxu0 0.0
    %1359 = vmatpush1.msra.mxu0 %v1173
    %1360 = vmatprep.subr.mxu0 0.0
    %1361 = vmatpush1.msra.mxu0 %v1174
    %1362 = vmatprep.subr.mxu0 0.0
    %1363 = vmatpush1.msra.mxu0 %v1175
    %1364 = vmatprep.subr.mxu0 0.0
    %1365 = vmatpush1.msra.mxu0 %v1176
    %1366 = vmatprep.subr.mxu0 0.0
    %1367 = vmatpush1.msra.mxu0 %v1177
    %1368 = vmatprep.subr.mxu0 0.0
    %1369 = vmatpush1.msra.mxu0 %v1178
    %1370 = vmatprep.subr.mxu0 0.0
    %1371 = vmatpush1.msra.mxu0 %v1179
    %1372 = vmatprep.subr.mxu0 0.0
    %1373 = vmatpush1.msra.mxu0 %v1180
    %1374 = vmatprep.subr.mxu0 0.0
    %1375 = vmatpush1.msra.mxu0 %v1181
    %1376 = vmatprep.subr.mxu0 0.0
    %1377 = vmatpush1.msra.mxu0 %v1182
    %1378 = vmatprep.subr.mxu0 0.0
    %1379 = vmatpush1.msra.mxu0 %v1183
    %1380 = vmatprep.subr.mxu0 0.0
    %1381 = vmatpush1.msra.mxu0 %v1184
    %1382 = vmatprep.subr.mxu0 0.0
    %1383 = vmatpush1.msra.mxu0 %v1185
    %1384 = vmatprep.subr.mxu0 0.0
    %1385 = vmatpush1.msra.mxu0 %v1186
    %1386 = vmatprep.subr.mxu0 0.0
    %1387 = vmatpush1.msra.mxu0 %v1187
    %1388 = vmatprep.subr.mxu0 0.0
    %1389 = vmatpush1.msra.mxu0 %v1188
    %1390 = vmatprep.subr.mxu0 0.0
    %1391 = vmatpush1.msra.mxu0 %v1189
    %1392 = vmatprep.subr.mxu0 0.0
    %1393 = vmatpush1.msra.mxu0 %v1190
    %1394 = vmatprep.subr.mxu0 0.0
    %1395 = vmatpush1.msra.mxu0 %v1191
    %1396 = vmatprep.subr.mxu0 0.0
    %1397 = vmatpush1.msra.mxu0 %v1192
    %1398 = vmatprep.mubr.f32.mxu0 %v1124
    %1399 = vmatmul.mubr.f32.gmra.mrb[0].mxu0 %v1123
    %v1400 = vpop.f32.mrb[0].mxu0
    %v1401 = vadd.f32 %v1331, %v1400
    %v1402 = vpop.f32.mrb[0].mxu0
    %1403 = vdwg.mxu0
    %1404 = vmatprep.subr.mxu0 0.0
    %1405 = vmatpush1.msra.mxu0 %v1193
    %1406 = vmatprep.subr.mxu0 0.0
    %1407 = vmatpush1.msra.mxu0 %v1194
    %1408 = vmatprep.subr.mxu0 0.0
    %1409 = vmatpush1.msra.mxu0 %v1195
    %1410 = vmatprep.subr.mxu0 0.0
    %1411 = vmatpush1.msra.mxu0 %v1196
    %1412 = vmatprep.subr.mxu0 0.0
    %1413 = vmatpush1.msra.mxu0 %v1197
    %1414 = vmatprep.subr.mxu0 0.0
    %1415 = vmatpush1.msra.mxu0 %v1198
    %1416 = vmatprep.subr.mxu0 0.0
    %1417 = vmatpush1.msra.mxu0 %v1199
    %1418 = vmatprep.subr.mxu0 0.0
    %1419 = vmatpush1.msra.mxu0 %v1200
    %1420 = vmatprep.subr.mxu0 0.0
    %1421 = vmatpush1.msra.mxu0 %v1201
    %1422 = vmatprep.subr.mxu0 0.0
    %1423 = vmatpush1.msra.mxu0 %v1202
    %1424 = vmatprep.subr.mxu0 0.0
    %1425 = vmatpush1.msra.mxu0 %v1203
    %1426 = vmatprep.subr.mxu0 0.0
    %1427 = vmatpush1.msra.mxu0 %v1204
    %1428 = vmatprep.subr.mxu0 0.0
    %1429 = vmatpush1.msra.mxu0 %v1205
    %1430 = vmatprep.subr.mxu0 0.0
    %1431 = vmatpush1.msra.mxu0 %v1206
    %1432 = vmatprep.subr.mxu0 0.0
    %1433 = vmatpush1.msra.mxu0 %v1207
    %1434 = vmatprep.subr.mxu0 0.0
    %1435 = vmatpush1.msra.mxu0 %v1208
    %1436 = vmatprep.subr.mxu0 0.0
    %1437 = vmatpush1.msra.mxu0 %v1209
    %1438 = vmatprep.subr.mxu0 0.0
    %1439 = vmatpush1.msra.mxu0 %v1210
    %1440 = vmatprep.subr.mxu0 0.0
    %1441 = vmatpush1.msra.mxu0 %v1211
    %1442 = vmatprep.subr.mxu0 0.0
    %1443 = vmatpush1.msra.mxu0 %v1212
    %1444 = vmatprep.subr.mxu0 0.0
    %1445 = vmatpush1.msra.mxu0 %v1213
    %1446 = vmatprep.subr.mxu0 0.0
    %1447 = vmatpush1.msra.mxu0 %v1214
    %1448 = vmatprep.subr.mxu0 0.0
    %1449 = vmatpush1.msra.mxu0 %v1215
    %1450 = vmatprep.subr.mxu0 0.0
    %1451 = vmatpush1.msra.mxu0 %v1216
    %1452 = vmatprep.subr.mxu0 0.0
    %1453 = vmatpush1.msra.mxu0 %v1217
    %1454 = vmatprep.subr.mxu0 0.0
    %1455 = vmatpush1.msra.mxu0 %v1218
    %1456 = vmatprep.subr.mxu0 0.0
    %1457 = vmatpush1.msra.mxu0 %v1219
    %1458 = vmatprep.subr.mxu0 0.0
    %1459 = vmatpush1.msra.mxu0 %v1220
    %1460 = vmatprep.subr.mxu0 0.0
    %1461 = vmatpush1.msra.mxu0 %v1221
    %1462 = vmatprep.subr.mxu0 0.0
    %1463 = vmatpush1.msra.mxu0 %v1222
    %1464 = vmatprep.subr.mxu0 0.0
    %1465 = vmatpush1.msra.mxu0 %v1223
    %1466 = vmatprep.subr.mxu0 0.0
    %1467 = vmatpush1.msra.mxu0 %v1224
    %1468 = vmatprep.mubr.f32.mxu0 %v1126
    %1469 = vmatmul.mubr.f32.gmra.mrb[0].mxu0 %v1125
    %v1470 = vpop.f32.mrb[0].mxu0
    %v1471 = vadd.f32 %v1401, %v1470
    %v1472 = vpop.f32.mrb[0].mxu0
    %1473 = vdwg.mxu0
    %1474 = vmatprep.subr.mxu0 0.0
    %1475 = vmatpush1.msra.mxu0 %v1225
    %1476 = vmatprep.subr.mxu0 0.0
    %1477 = vmatpush1.msra.mxu0 %v1226
    %1478 = vmatprep.subr.mxu0 0.0
    %1479 = vmatpush1.msra.mxu0 %v1227
    %1480 = vmatprep.subr.mxu0 0.0
    %1481 = vmatpush1.msra.mxu0 %v1228
    %1482 = vmatprep.subr.mxu0 0.0
    %1483 = vmatpush1.msra.mxu0 %v1229
    %1484 = vmatprep.subr.mxu0 0.0
    %1485 = vmatpush1.msra.mxu0 %v1230
    %1486 = vmatprep.subr.mxu0 0.0
    %1487 = vmatpush1.msra.mxu0 %v1231
    %1488 = vmatprep.subr.mxu0 0.0
    %1489 = vmatpush1.msra.mxu0 %v1232
    %1490 = vmatprep.subr.mxu0 0.0
    %1491 = vmatpush1.msra.mxu0 %v1233
    %1492 = vmatprep.subr.mxu0 0.0
    %1493 = vmatpush1.msra.mxu0 %v1234
    %1494 = vmatprep.subr.mxu0 0.0
    %1495 = vmatpush1.msra.mxu0 %v1235
    %1496 = vmatprep.subr.mxu0 0.0
    %1497 = vmatpush1.msra.mxu0 %v1236
    %1498 = vmatprep.subr.mxu0 0.0
    %1499 = vmatpush1.msra.mxu0 %v1237
    %1500 = vmatprep.subr.mxu0 0.0
    %1501 = vmatpush1.msra.mxu0 %v1238
    %1502 = vmatprep.subr.mxu0 0.0
    %1503 = vmatpush1.msra.mxu0 %v1239
    %1504 = vmatprep.subr.mxu0 0.0
    %1505 = vmatpush1.msra.mxu0 %v1240
    %1506 = vmatprep.subr.mxu0 0.0
    %1507 = vmatpush1.msra.mxu0 %v1241
    %1508 = vmatprep.subr.mxu0 0.0
    %1509 = vmatpush1.msra.mxu0 %v1242
    %1510 = vmatprep.subr.mxu0 0.0
    %1511 = vmatpush1.msra.mxu0 %v1243
    %1512 = vmatprep.subr.mxu0 0.0
    %1513 = vmatpush1.msra.mxu0 %v1244
    %1514 = vmatprep.subr.mxu0 0.0
    %1515 = vmatpush1.msra.mxu0 %v1245
    %1516 = vmatprep.subr.mxu0 0.0
    %1517 = vmatpush1.msra.mxu0 %v1246
    %1518 = vmatprep.subr.mxu0 0.0
    %1519 = vmatpush1.msra.mxu0 %v1247
    %1520 = vmatprep.subr.mxu0 0.0
    %1521 = vmatpush1.msra.mxu0 %v1248
    %1522 = vmatprep.subr.mxu0 0.0
    %1523 = vmatpush1.msra.mxu0 %v1249
    %1524 = vmatprep.subr.mxu0 0.0
    %1525 = vmatpush1.msra.mxu0 %v1250
    %1526 = vmatprep.subr.mxu0 0.0
    %1527 = vmatpush1.msra.mxu0 %v1251
    %1528 = vmatprep.subr.mxu0 0.0
    %1529 = vmatpush1.msra.mxu0 %v1252
    %1530 = vmatprep.subr.mxu0 0.0
    %1531 = vmatpush1.msra.mxu0 %v1253
    %1532 = vmatprep.subr.mxu0 0.0
    %1533 = vmatpush1.msra.mxu0 %v1254
    %1534 = vmatprep.subr.mxu0 0.0
    %1535 = vmatpush1.msra.mxu0 %v1255
    %1536 = vmatprep.subr.mxu0 0.0
    %1537 = vmatpush1.msra.mxu0 %v1256
    %1538 = vmatprep.mubr.f32.mxu0 %v1128
    %1539 = vmatmul.mubr.f32.gmra.mrb[0].mxu0 %v1127
    %v1540 = vpop.f32.mrb[0].mxu0
    %v1541 = vadd.f32 %v1471, %v1540
    %v1542 = vpop.f32.mrb[0].mxu0
    %1543 = vdwg.mxu0
    %v1544 = vld [vmem:[#allocation7] sm:$0xff]
    %v1545 = vld [vmem:[#allocation7 + $0x8] sm:$0xff]
    %v1546 = vld [vmem:[#allocation7 + $0x10] sm:$0xff]
    %v1547 = vld [vmem:[#allocation7 + $0x18] sm:$0xff]
    %v1548 = vld [vmem:[#allocation7 + $0x20] sm:$0xff]
    %v1549 = vld [vmem:[#allocation7 + $0x28] sm:$0xff]
    %v1550 = vld [vmem:[#allocation7 + $0x30] sm:$0xff]
    %v1551 = vld [vmem:[#allocation7 + $0x38] sm:$0xff]
    %v1552 = vld [vmem:[#allocation7 + $0x40] sm:$0xff]
    %v1553 = vld [vmem:[#allocation7 + $0x48] sm:$0xff]
    %v1554 = vld [vmem:[#allocation7 + $0x50] sm:$0xff]
    %v1555 = vld [vmem:[#allocation7 + $0x58] sm:$0xff]
    %v1556 = vld [vmem:[#allocation7 + $0x60] sm:$0xff]
    %v1557 = vld [vmem:[#allocation7 + $0x68] sm:$0xff]
    %v1558 = vld [vmem:[#allocation7 + $0x70] sm:$0xff]
    %v1559 = vld [vmem:[#allocation7 + $0x78] sm:$0xff]
    %v1560 = vld [vmem:[%s7] sm:$0x1]
    %v1562 = vlaneseq
    %v1563 = vshrl.u32 %v1562, 7
    %v1564 = vsub.s32 0, %v1563
    %v1565 = vrot.slane %v1560, %v1564
    %1567 = vmatprep.subr.mxu0 0.0
    %1568 = vmatpush1.msra.mxu0 %v1544
    %1569 = vmatprep.subr.mxu0 0.0
    %1570 = vmatpush1.msra.mxu0 %v1545
    %1571 = vmatprep.subr.mxu0 0.0
    %1572 = vmatpush1.msra.mxu0 %v1546
    %1573 = vmatprep.subr.mxu0 0.0
    %1574 = vmatpush1.msra.mxu0 %v1547
    %1575 = vmatprep.subr.mxu0 0.0
    %1576 = vmatpush1.msra.mxu0 %v1548
    %1577 = vmatprep.subr.mxu0 0.0
    %1578 = vmatpush1.msra.mxu0 %v1549
    %1579 = vmatprep.subr.mxu0 0.0
    %1580 = vmatpush1.msra.mxu0 %v1550
    %1581 = vmatprep.subr.mxu0 0.0
    %1582 = vmatpush1.msra.mxu0 %v1551
    %1583 = vmatprep.subr.mxu0 0.0
    %1584 = vmatpush1.msra.mxu0 %v1552
    %1585 = vmatprep.subr.mxu0 0.0
    %1586 = vmatpush1.msra.mxu0 %v1553
    %1587 = vmatprep.subr.mxu0 0.0
    %1588 = vmatpush1.msra.mxu0 %v1554
    %1589 = vmatprep.subr.mxu0 0.0
    %1590 = vmatpush1.msra.mxu0 %v1555
    %1591 = vmatprep.subr.mxu0 0.0
    %1592 = vmatpush1.msra.mxu0 %v1556
    %1593 = vmatprep.subr.mxu0 0.0
    %1594 = vmatpush1.msra.mxu0 %v1557
    %1595 = vmatprep.subr.mxu0 0.0
    %1596 = vmatpush1.msra.mxu0 %v1558
    %1597 = vmatprep.subr.mxu0 0.0
    %1598 = vmatpush1.msra.mxu0 %v1559
    %1599 = vmatprep.subr.mxu0 0.0
    %1600 = vmatpush1.msra.mxu0 0.0
    %1601 = vmatprep.subr.mxu0 0.0
    %1602 = vmatpush1.msra.mxu0 0.0
    %1603 = vmatprep.subr.mxu0 0.0
    %1604 = vmatpush1.msra.mxu0 0.0
    %1605 = vmatprep.subr.mxu0 0.0
    %1606 = vmatpush1.msra.mxu0 0.0
    %1607 = vmatprep.subr.mxu0 0.0
    %1608 = vmatpush1.msra.mxu0 0.0
    %1609 = vmatprep.subr.mxu0 0.0
    %1610 = vmatpush1.msra.mxu0 0.0
    %1611 = vmatprep.subr.mxu0 0.0
    %1612 = vmatpush1.msra.mxu0 0.0
    %1613 = vmatprep.subr.mxu0 0.0
    %1614 = vmatpush1.msra.mxu0 0.0
    %1615 = vmatprep.subr.mxu0 0.0
    %1616 = vmatpush1.msra.mxu0 0.0
    %1617 = vmatprep.subr.mxu0 0.0
    %1618 = vmatpush1.msra.mxu0 0.0
    %1619 = vmatprep.subr.mxu0 0.0
    %1620 = vmatpush1.msra.mxu0 0.0
    %1621 = vmatprep.subr.mxu0 0.0
    %1622 = vmatpush1.msra.mxu0 0.0
    %1623 = vmatprep.subr.mxu0 0.0
    %1624 = vmatpush1.msra.mxu0 0.0
    %1625 = vmatprep.subr.mxu0 0.0
    %1626 = vmatpush1.msra.mxu0 0.0
    %1627 = vmatprep.subr.mxu0 0.0
    %1628 = vmatpush1.msra.mxu0 0.0
    %1629 = vmatprep.subr.mxu0 0.0
    %1630 = vmatpush1.msra.mxu0 0.0
    %1631 = vmatprep.mubr.f32.mxu0 0.0
    %1632 = vmatmul.mubr.f32.gmra.mrb[0].mxu0 %v1541
    %v1633 = vpop.f32.mrb[0].mxu0
    %v1634 = vadd.f32 %v1565, %v1633
    %v1635 = vpop.f32.mrb[0].mxu0
    %1636 = vdwg.mxu0
    %vm1637 = vcmp.lt.s32.totalorder %v222, 8
    %v1638 = vsel %vm1637, %v1634, -inf
    %1639 = vmax.xlane.f32.xlu0 %v1638
    %v1640 = vpop.xlane.xlu0 %1639
    %v1641 = vsub.f32 %v1638, %v1640
    %v1642 = vmul.f32 %v1641, 1.442695
    %v1643 = vpow.pop %v1642
    %1644 = vadd.xlane.f32.xlu0 %v1643
    %v1645 = vpop.xlane.xlu0 %1644
    %v1646 = vrcp.pop %v1645
    %v1647 = vmul.f32 %v1643, %v1646
    %1648 = vst [vmem:[#allocation9] sm:$0xff] %v1647
    // Predicated region
    $region42: #{tpu_custom_call.1} parent=1 // pred_check
      _
    $region43: #{tpu_custom_call.1} parent=1 // pred_check_branch
      %1650 = sbr.rel (0) target = $region45
    $region44: #{tpu_custom_call.1} parent=1 // pred_region
      %s1652 = ssub.s32 128, 128
      %1653 = vsyncadd [#allocation6], %s1652
      %s1655 = sshll.u32 [#allocation9], 4
      %s1656 = int_to_ptr.vmem [resolvable:$true] %s1655
      %1658 = dma.vmem_to_hbm [thread:$0]  %s1656, 128, %s8, [#allocation6]
    $region45: #{tpu_custom_call.1} parent=1 // pred_fallthru
      _
    // Predicated region
    $region46: #{tpu_custom_call.1} parent=1 // pred_check
      _
    $region47: #{tpu_custom_call.1} parent=1 // pred_check_branch
      %1660 = sbr.rel (0) target = $region49
    $region48: #{tpu_custom_call.1} parent=1 // pred_region
      %1661 = dma.done [#allocation6], 128
    $region49: #{tpu_custom_call.1} parent=1 // pred_fallthru
      _
    %1662 = vsyncpa [#allocation5], 1
    %1663 = vsyncpa [#allocation8], 1
    %1664 = vsyncpa [#allocation6], 1

</llo_original>
